<compile_context>
chip_gen: v7x
topology: tpu7x:2x2x1
jax: 0.10.0
libtpu: 0.0.40
codegen_flags: <defaults>
</compile_context>

<pallas_src>
import functools

import jax
import jax.numpy as jnp
from jax import lax
from jax.experimental import pallas as pl
from jax.experimental.pallas import tpu as pltpu


def _pixelcnn_kernel(w_ref, b_ref, x_ref, o_ref, pad_ref, *, H, W, taps):
    """Runs all masked-conv layers for one batch tile (lane-packed batch).

    w_ref   : SMEM, flat (n_layers*9,) already-masked 3x3 weights
    b_ref   : SMEM, (n_layers,) biases
    x_ref   : VMEM, (H, W, B) input tile   (B = lane-packed batch, 128)
    o_ref   : VMEM, (H, W, B) output tile
    pad_ref : VMEM scratch, (H+2, W+2, B) zero-border activation buffer
    taps    : static tuple per layer of live (di, dj) kernel taps
    """
    B = pad_ref.shape[-1]

    # Zero only the 1-pixel border (conv padding=1).  The interior is fully
    # overwritten below, and border zeroing is done every grid step so it is
    # correct regardless of how grid steps shard across TensorCores.
    zrow = jnp.zeros((1, W + 2, B), jnp.float32)
    zcol = jnp.zeros((H + 2, 1, B), jnp.float32)
    pad_ref[pl.ds(0, 1), :, :] = zrow
    pad_ref[pl.ds(H + 1, 1), :, :] = zrow
    pad_ref[:, pl.ds(0, 1), :] = zcol
    pad_ref[:, pl.ds(W + 1, 1), :] = zcol

    # Load input into the interior of the padded buffer.
    pad_ref[pl.ds(1, H), pl.ds(1, W), :] = x_ref[...]

    n_layers = len(taps)
    for l, live in enumerate(taps):
        # Bias folded into the first live tap (no separate zeros+broadcast).
        di0, dj0 = live[0]
        acc = (w_ref[l * 9 + di0 * 3 + dj0]
               * pad_ref[pl.ds(di0, H), pl.ds(dj0, W), :]
               + b_ref[l])
        # Remaining live taps only (statically-zero mask taps are skipped).
        # Shifts are along H (major) and W (sublane); lanes stay aligned.
        for di, dj in live[1:]:
            acc = acc + w_ref[l * 9 + di * 3 + dj] * pad_ref[pl.ds(di, H), pl.ds(dj, W), :]
        if l + 1 < n_layers:
            # Intermediate layer: write back into the interior (border stays 0).
            pad_ref[pl.ds(1, H), pl.ds(1, W), :] = acc
        else:
            # Last layer: write straight to the lane-dense output block.
            o_ref[...] = acc


def pixelcnn_forward(x, masked_w, bias, taps, *, b_lanes=128):
    """x: (N, 1, H, W) f32; masked_w: (L, 3, 3) f32 (mask already applied);
    bias: (L,) f32; taps: static per-layer live (di, dj) tuples.
    Returns (N, 1, H, W) f32."""
    N, C, H, W = x.shape
    assert C == 1, "PixelCNN demo uses a single channel"
    n_layers = int(bias.shape[0])
    assert len(taps) == n_layers

    # Batch-to-lanes layout: (N, H, W) -> (H, W, N_pad), N_pad multiple of 128.
    n_tiles = pl.cdiv(N, b_lanes)
    N_pad = n_tiles * b_lanes
    x_t = jnp.transpose(x.reshape(N, H, W), (1, 2, 0))
    x_t = jnp.pad(x_t, ((0, 0), (0, 0), (0, N_pad - N)))
    w_flat = masked_w.reshape(-1)

    kernel = functools.partial(_pixelcnn_kernel, H=H, W=W, taps=taps)

    # VMEM budget (per grid step, double-buffered in/out + scratch):
    #   2*2*(H*W*b_lanes*4B) + (H+2)*(W+2)*b_lanes*4B  ~= 0.75 MiB at H=W=16,
    # comfortably under the default scoped VMEM limit on v5e/v6e/v7x.
    out = pl.pallas_call(
        kernel,
        out_shape=jax.ShapeDtypeStruct((H, W, N_pad), jnp.float32),
        grid=(n_tiles,),
        in_specs=[
            pl.BlockSpec(memory_space=pltpu.MemorySpace.SMEM),      # weights (scalars)
            pl.BlockSpec(memory_space=pltpu.MemorySpace.SMEM),      # biases  (scalars)
            pl.BlockSpec((H, W, b_lanes), lambda n: (0, 0, n)),     # lane-packed batch tile
        ],
        out_specs=pl.BlockSpec((H, W, b_lanes), lambda n: (0, 0, n)),
        scratch_shapes=[pltpu.VMEM((H + 2, W + 2, b_lanes), jnp.float32)],
        # Batch tiles are independent -> parallel (shards across v7x's 2 TCs).
        compiler_params=pltpu.CompilerParams(dimension_semantics=("parallel",)),
    )(w_flat, bias, x_t)

    out = jnp.transpose(out[:, :, :N], (2, 0, 1)).reshape(N, 1, H, W)
    return out


def pixelcnn_reference(x, masked_w, bias):
    """Pure-JAX reference matching torch: sequential conv2d(padding=1) + bias."""
    y = x
    for l in range(bias.shape[0]):
        w = masked_w[l].reshape(1, 1, 3, 3)
        y = lax.conv_general_dilated(
            y, w, window_strides=(1, 1), padding=((1, 1), (1, 1)),
            dimension_numbers=("NCHW", "OIHW", "NCHW"),
        ) + bias[l]
    return y


def pixelcnn_taps(n_layers):
    """Static live-tap structure for 3x3 PixelCNN masks.
    Type 'A' (first layer) excludes the center pixel; type 'B' includes it."""
    taps_a = ((0, 0), (0, 1), (0, 2), (1, 0))
    taps_b = taps_a + ((1, 1),)
    return (taps_a,) + (taps_b,) * (n_layers - 1)


def make_params(key, n_layers):
    """Deterministic synthetic parameters for n_layers MaskConv2d(1,1,3) layers."""
    kw, kb = jax.random.split(key)
    w = jax.random.normal(kw, (n_layers, 3, 3), jnp.float32) * 0.3
    b = jax.random.normal(kb, (n_layers,), jnp.float32) * 0.1
    mask_a = jnp.array([[1, 1, 1], [1, 0, 0], [0, 0, 0]], jnp.float32)
    mask_b = jnp.array([[1, 1, 1], [1, 1, 0], [0, 0, 0]], jnp.float32)
    masks = jnp.stack([mask_a] + [mask_b] * (n_layers - 1))
    return w * masks, b


if __name__ == "__main__":
    key = jax.random.PRNGKey(0)
    k_x, k_p = jax.random.split(key)

    n_layers = 4                       # 1 x 'A' layer + 3 x 'B' layers
    N, C, H, W = 2, 1, 16, 16
    x = jax.random.normal(k_x, (N, C, H, W), jnp.float32)
    masked_w, bias = make_params(k_p, n_layers)
    taps = pixelcnn_taps(n_layers)

    out = pixelcnn_forward(x, masked_w, bias, taps)
    out = jax.block_until_ready(out)

    ref = jax.block_until_ready(pixelcnn_reference(x, masked_w, bias))
    assert out.shape == (N, C, H, W)
    assert jnp.allclose(out, ref, atol=1e-4, rtol=1e-4), "mismatch vs reference"

    print("KERNEL_OK")
</pallas_src>

<mosaic_0001>
module attributes {stable_mosaic.version = 11 : i64} {
  func.func @_pixelcnn_kernel(%arg0: i32, %arg1: memref<36xf32, #tpu.memory_space<smem>>, %arg2: memref<4xf32, #tpu.memory_space<smem>>, %arg3: memref<16x16x128xf32, #tpu.memory_space<vmem>>, %arg4: memref<16x16x128xf32, #tpu.memory_space<vmem>>, %arg5: memref<18x18x128xf32, #tpu.memory_space<vmem>>) attributes {dimension_semantics = [#tpu.dimension_semantics<parallel>], iteration_bounds = array<i64: 1>, scalar_prefetch = 0 : i64, scratch_operands = 1 : i64, tpu.core_type = #tpu.core_type<tc>, window_params = [{transform_indices = @transform_0, window_bounds = array<i64: 36>}, {transform_indices = @transform_1, window_bounds = array<i64: 4>}, {transform_indices = @transform_2, window_bounds = array<i64: 16, 16, 128>}, {transform_indices = @transform_3, window_bounds = array<i64: 16, 16, 128>}]} {
    %cst = arith.constant 0.000000e+00 : f32
    %0 = vector.broadcast %cst : f32 to vector<1x18x128xf32>
    %cst_0 = arith.constant 0.000000e+00 : f32
    %1 = vector.broadcast %cst_0 : f32 to vector<18x1x128xf32>
    %c0 = arith.constant 0 : index
    %c0_1 = arith.constant 0 : index
    %c0_2 = arith.constant 0 : index
    %2 = vector.load %arg5[%c0, %c0_1, %c0_2] : memref<18x18x128xf32, #tpu.memory_space<vmem>>, vector<1x18x128xf32>
    tpu.vector_store %arg5[%c0, %c0_1, %c0_2], %0 {strides = array<i32>} : memref<18x18x128xf32, #tpu.memory_space<vmem>>, vector<1x18x128xf32>,
    %c17 = arith.constant 17 : index
    %c0_3 = arith.constant 0 : index
    %c0_4 = arith.constant 0 : index
    %3 = vector.load %arg5[%c17, %c0_3, %c0_4] : memref<18x18x128xf32, #tpu.memory_space<vmem>>, vector<1x18x128xf32>
    tpu.vector_store %arg5[%c17, %c0_3, %c0_4], %0 {strides = array<i32>} : memref<18x18x128xf32, #tpu.memory_space<vmem>>, vector<1x18x128xf32>,
    %c0_5 = arith.constant 0 : index
    %c0_6 = arith.constant 0 : index
    %c0_7 = arith.constant 0 : index
    %4 = vector.load %arg5[%c0_5, %c0_6, %c0_7] : memref<18x18x128xf32, #tpu.memory_space<vmem>>, vector<18x1x128xf32>
    tpu.vector_store %arg5[%c0_5, %c0_6, %c0_7], %1 {strides = array<i32>} : memref<18x18x128xf32, #tpu.memory_space<vmem>>, vector<18x1x128xf32>,
    %c0_8 = arith.constant 0 : index
    %c17_9 = arith.constant 17 : index
    %c0_10 = arith.constant 0 : index
    %5 = vector.load %arg5[%c0_8, %c17_9, %c0_10] : memref<18x18x128xf32, #tpu.memory_space<vmem>>, vector<18x1x128xf32>
    tpu.vector_store %arg5[%c0_8, %c17_9, %c0_10], %1 {strides = array<i32>} : memref<18x18x128xf32, #tpu.memory_space<vmem>>, vector<18x1x128xf32>,
    %c0_11 = arith.constant 0 : index
    %c0_12 = arith.constant 0 : index
    %c0_13 = arith.constant 0 : index
    %6 = vector.load %arg3[%c0_11, %c0_12, %c0_13] : memref<16x16x128xf32, #tpu.memory_space<vmem>>, vector<16x16x128xf32>
    %c1 = arith.constant 1 : index
    %c1_14 = arith.constant 1 : index
    %c0_15 = arith.constant 0 : index
    %7 = vector.load %arg5[%c1, %c1_14, %c0_15] : memref<18x18x128xf32, #tpu.memory_space<vmem>>, vector<16x16x128xf32>
    tpu.vector_store %arg5[%c1, %c1_14, %c0_15], %6 {strides = array<i32>} : memref<18x18x128xf32, #tpu.memory_space<vmem>>, vector<16x16x128xf32>,
    %c0_16 = arith.constant 0 : index
    %8 = memref.load %arg1[%c0_16] : memref<36xf32, #tpu.memory_space<smem>>
    %c0_17 = arith.constant 0 : index
    %c0_18 = arith.constant 0 : index
    %c0_19 = arith.constant 0 : index
    %9 = vector.load %arg5[%c0_17, %c0_18, %c0_19] : memref<18x18x128xf32, #tpu.memory_space<vmem>>, vector<16x16x128xf32>
    %10 = vector.broadcast %8 : f32 to vector<16x16x128xf32>
    %11 = arith.mulf %10, %9 : vector<16x16x128xf32>
    %c0_20 = arith.constant 0 : index
    %12 = memref.load %arg2[%c0_20] : memref<4xf32, #tpu.memory_space<smem>>
    %13 = vector.broadcast %12 : f32 to vector<16x16x128xf32>
    %14 = arith.addf %11, %13 : vector<16x16x128xf32>
    %c1_21 = arith.constant 1 : index
    %15 = memref.load %arg1[%c1_21] : memref<36xf32, #tpu.memory_space<smem>>
    %c0_22 = arith.constant 0 : index
    %c1_23 = arith.constant 1 : index
    %c0_24 = arith.constant 0 : index
    %16 = vector.load %arg5[%c0_22, %c1_23, %c0_24] : memref<18x18x128xf32, #tpu.memory_space<vmem>>, vector<16x16x128xf32>
    %17 = vector.broadcast %15 : f32 to vector<16x16x128xf32>
    %18 = arith.mulf %17, %16 : vector<16x16x128xf32>
    %19 = arith.addf %14, %18 : vector<16x16x128xf32>
    %c2 = arith.constant 2 : index
    %20 = memref.load %arg1[%c2] : memref<36xf32, #tpu.memory_space<smem>>
    %c0_25 = arith.constant 0 : index
    %c2_26 = arith.constant 2 : index
    %c0_27 = arith.constant 0 : index
    %21 = vector.load %arg5[%c0_25, %c2_26, %c0_27] : memref<18x18x128xf32, #tpu.memory_space<vmem>>, vector<16x16x128xf32>
    %22 = vector.broadcast %20 : f32 to vector<16x16x128xf32>
    %23 = arith.mulf %22, %21 : vector<16x16x128xf32>
    %24 = arith.addf %19, %23 : vector<16x16x128xf32>
    %c3 = arith.constant 3 : index
    %25 = memref.load %arg1[%c3] : memref<36xf32, #tpu.memory_space<smem>>
    %c1_28 = arith.constant 1 : index
    %c0_29 = arith.constant 0 : index
    %c0_30 = arith.constant 0 : index
    %26 = vector.load %arg5[%c1_28, %c0_29, %c0_30] : memref<18x18x128xf32, #tpu.memory_space<vmem>>, vector<16x16x128xf32>
    %27 = vector.broadcast %25 : f32 to vector<16x16x128xf32>
    %28 = arith.mulf %27, %26 : vector<16x16x128xf32>
    %29 = arith.addf %24, %28 : vector<16x16x128xf32>
    %c1_31 = arith.constant 1 : index
    %c1_32 = arith.constant 1 : index
    %c0_33 = arith.constant 0 : index
    %30 = vector.load %arg5[%c1_31, %c1_32, %c0_33] : memref<18x18x128xf32, #tpu.memory_space<vmem>>, vector<16x16x128xf32>
    tpu.vector_store %arg5[%c1_31, %c1_32, %c0_33], %29 {strides = array<i32>} : memref<18x18x128xf32, #tpu.memory_space<vmem>>, vector<16x16x128xf32>,
    %c9 = arith.constant 9 : index
    %31 = memref.load %arg1[%c9] : memref<36xf32, #tpu.memory_space<smem>>
    %c0_34 = arith.constant 0 : index
    %c0_35 = arith.constant 0 : index
    %c0_36 = arith.constant 0 : index
    %32 = vector.load %arg5[%c0_34, %c0_35, %c0_36] : memref<18x18x128xf32, #tpu.memory_space<vmem>>, vector<16x16x128xf32>
    %33 = vector.broadcast %31 : f32 to vector<16x16x128xf32>
    %34 = arith.mulf %33, %32 : vector<16x16x128xf32>
    %c1_37 = arith.constant 1 : index
    %35 = memref.load %arg2[%c1_37] : memref<4xf32, #tpu.memory_space<smem>>
    %36 = vector.broadcast %35 : f32 to vector<16x16x128xf32>
    %37 = arith.addf %34, %36 : vector<16x16x128xf32>
    %c10 = arith.constant 10 : index
    %38 = memref.load %arg1[%c10] : memref<36xf32, #tpu.memory_space<smem>>
    %c0_38 = arith.constant 0 : index
    %c1_39 = arith.constant 1 : index
    %c0_40 = arith.constant 0 : index
    %39 = vector.load %arg5[%c0_38, %c1_39, %c0_40] : memref<18x18x128xf32, #tpu.memory_space<vmem>>, vector<16x16x128xf32>
    %40 = vector.broadcast %38 : f32 to vector<16x16x128xf32>
    %41 = arith.mulf %40, %39 : vector<16x16x128xf32>
    %42 = arith.addf %37, %41 : vector<16x16x128xf32>
    %c11 = arith.constant 11 : index
    %43 = memref.load %arg1[%c11] : memref<36xf32, #tpu.memory_space<smem>>
    %c0_41 = arith.constant 0 : index
    %c2_42 = arith.constant 2 : index
    %c0_43 = arith.constant 0 : index
    %44 = vector.load %arg5[%c0_41, %c2_42, %c0_43] : memref<18x18x128xf32, #tpu.memory_space<vmem>>, vector<16x16x128xf32>
    %45 = vector.broadcast %43 : f32 to vector<16x16x128xf32>
    %46 = arith.mulf %45, %44 : vector<16x16x128xf32>
    %47 = arith.addf %42, %46 : vector<16x16x128xf32>
    %c12 = arith.constant 12 : index
    %48 = memref.load %arg1[%c12] : memref<36xf32, #tpu.memory_space<smem>>
    %c1_44 = arith.constant 1 : index
    %c0_45 = arith.constant 0 : index
    %c0_46 = arith.constant 0 : index
    %49 = vector.load %arg5[%c1_44, %c0_45, %c0_46] : memref<18x18x128xf32, #tpu.memory_space<vmem>>, vector<16x16x128xf32>
    %50 = vector.broadcast %48 : f32 to vector<16x16x128xf32>
    %51 = arith.mulf %50, %49 : vector<16x16x128xf32>
    %52 = arith.addf %47, %51 : vector<16x16x128xf32>
    %c13 = arith.constant 13 : index
    %53 = memref.load %arg1[%c13] : memref<36xf32, #tpu.memory_space<smem>>
    %c1_47 = arith.constant 1 : index
    %c1_48 = arith.constant 1 : index
    %c0_49 = arith.constant 0 : index
    %54 = vector.load %arg5[%c1_47, %c1_48, %c0_49] : memref<18x18x128xf32, #tpu.memory_space<vmem>>, vector<16x16x128xf32>
    %55 = vector.broadcast %53 : f32 to vector<16x16x128xf32>
    %56 = arith.mulf %55, %54 : vector<16x16x128xf32>
    %57 = arith.addf %52, %56 : vector<16x16x128xf32>
    %c1_50 = arith.constant 1 : index
    %c1_51 = arith.constant 1 : index
    %c0_52 = arith.constant 0 : index
    %58 = vector.load %arg5[%c1_50, %c1_51, %c0_52] : memref<18x18x128xf32, #tpu.memory_space<vmem>>, vector<16x16x128xf32>
    tpu.vector_store %arg5[%c1_50, %c1_51, %c0_52], %57 {strides = array<i32>} : memref<18x18x128xf32, #tpu.memory_space<vmem>>, vector<16x16x128xf32>,
    %c18 = arith.constant 18 : index
    %59 = memref.load %arg1[%c18] : memref<36xf32, #tpu.memory_space<smem>>
    %c0_53 = arith.constant 0 : index
    %c0_54 = arith.constant 0 : index
    %c0_55 = arith.constant 0 : index
    %60 = vector.load %arg5[%c0_53, %c0_54, %c0_55] : memref<18x18x128xf32, #tpu.memory_space<vmem>>, vector<16x16x128xf32>
    %61 = vector.broadcast %59 : f32 to vector<16x16x128xf32>
    %62 = arith.mulf %61, %60 : vector<16x16x128xf32>
    %c2_56 = arith.constant 2 : index
    %63 = memref.load %arg2[%c2_56] : memref<4xf32, #tpu.memory_space<smem>>
    %64 = vector.broadcast %63 : f32 to vector<16x16x128xf32>
    %65 = arith.addf %62, %64 : vector<16x16x128xf32>
    %c19 = arith.constant 19 : index
    %66 = memref.load %arg1[%c19] : memref<36xf32, #tpu.memory_space<smem>>
    %c0_57 = arith.constant 0 : index
    %c1_58 = arith.constant 1 : index
    %c0_59 = arith.constant 0 : index
    %67 = vector.load %arg5[%c0_57, %c1_58, %c0_59] : memref<18x18x128xf32, #tpu.memory_space<vmem>>, vector<16x16x128xf32>
    %68 = vector.broadcast %66 : f32 to vector<16x16x128xf32>
    %69 = arith.mulf %68, %67 : vector<16x16x128xf32>
    %70 = arith.addf %65, %69 : vector<16x16x128xf32>
    %c20 = arith.constant 20 : index
    %71 = memref.load %arg1[%c20] : memref<36xf32, #tpu.memory_space<smem>>
    %c0_60 = arith.constant 0 : index
    %c2_61 = arith.constant 2 : index
    %c0_62 = arith.constant 0 : index
    %72 = vector.load %arg5[%c0_60, %c2_61, %c0_62] : memref<18x18x128xf32, #tpu.memory_space<vmem>>, vector<16x16x128xf32>
    %73 = vector.broadcast %71 : f32 to vector<16x16x128xf32>
    %74 = arith.mulf %73, %72 : vector<16x16x128xf32>
    %75 = arith.addf %70, %74 : vector<16x16x128xf32>
    %c21 = arith.constant 21 : index
    %76 = memref.load %arg1[%c21] : memref<36xf32, #tpu.memory_space<smem>>
    %c1_63 = arith.constant 1 : index
    %c0_64 = arith.constant 0 : index
    %c0_65 = arith.constant 0 : index
    %77 = vector.load %arg5[%c1_63, %c0_64, %c0_65] : memref<18x18x128xf32, #tpu.memory_space<vmem>>, vector<16x16x128xf32>
    %78 = vector.broadcast %76 : f32 to vector<16x16x128xf32>
    %79 = arith.mulf %78, %77 : vector<16x16x128xf32>
    %80 = arith.addf %75, %79 : vector<16x16x128xf32>
    %c22 = arith.constant 22 : index
    %81 = memref.load %arg1[%c22] : memref<36xf32, #tpu.memory_space<smem>>
    %c1_66 = arith.constant 1 : index
    %c1_67 = arith.constant 1 : index
    %c0_68 = arith.constant 0 : index
    %82 = vector.load %arg5[%c1_66, %c1_67, %c0_68] : memref<18x18x128xf32, #tpu.memory_space<vmem>>, vector<16x16x128xf32>
    %83 = vector.broadcast %81 : f32 to vector<16x16x128xf32>
    %84 = arith.mulf %83, %82 : vector<16x16x128xf32>
    %85 = arith.addf %80, %84 : vector<16x16x128xf32>
    %c1_69 = arith.constant 1 : index
    %c1_70 = arith.constant 1 : index
    %c0_71 = arith.constant 0 : index
    %86 = vector.load %arg5[%c1_69, %c1_70, %c0_71] : memref<18x18x128xf32, #tpu.memory_space<vmem>>, vector<16x16x128xf32>
    tpu.vector_store %arg5[%c1_69, %c1_70, %c0_71], %85 {strides = array<i32>} : memref<18x18x128xf32, #tpu.memory_space<vmem>>, vector<16x16x128xf32>,
    %c27 = arith.constant 27 : index
    %87 = memref.load %arg1[%c27] : memref<36xf32, #tpu.memory_space<smem>>
    %c0_72 = arith.constant 0 : index
    %c0_73 = arith.constant 0 : index
    %c0_74 = arith.constant 0 : index
    %88 = vector.load %arg5[%c0_72, %c0_73, %c0_74] : memref<18x18x128xf32, #tpu.memory_space<vmem>>, vector<16x16x128xf32>
    %89 = vector.broadcast %87 : f32 to vector<16x16x128xf32>
    %90 = arith.mulf %89, %88 : vector<16x16x128xf32>
    %c3_75 = arith.constant 3 : index
    %91 = memref.load %arg2[%c3_75] : memref<4xf32, #tpu.memory_space<smem>>
    %92 = vector.broadcast %91 : f32 to vector<16x16x128xf32>
    %93 = arith.addf %90, %92 : vector<16x16x128xf32>
    %c28 = arith.constant 28 : index
    %94 = memref.load %arg1[%c28] : memref<36xf32, #tpu.memory_space<smem>>
    %c0_76 = arith.constant 0 : index
    %c1_77 = arith.constant 1 : index
    %c0_78 = arith.constant 0 : index
    %95 = vector.load %arg5[%c0_76, %c1_77, %c0_78] : memref<18x18x128xf32, #tpu.memory_space<vmem>>, vector<16x16x128xf32>
    %96 = vector.broadcast %94 : f32 to vector<16x16x128xf32>
    %97 = arith.mulf %96, %95 : vector<16x16x128xf32>
    %98 = arith.addf %93, %97 : vector<16x16x128xf32>
    %c29 = arith.constant 29 : index
    %99 = memref.load %arg1[%c29] : memref<36xf32, #tpu.memory_space<smem>>
    %c0_79 = arith.constant 0 : index
    %c2_80 = arith.constant 2 : index
    %c0_81 = arith.constant 0 : index
    %100 = vector.load %arg5[%c0_79, %c2_80, %c0_81] : memref<18x18x128xf32, #tpu.memory_space<vmem>>, vector<16x16x128xf32>
    %101 = vector.broadcast %99 : f32 to vector<16x16x128xf32>
    %102 = arith.mulf %101, %100 : vector<16x16x128xf32>
    %103 = arith.addf %98, %102 : vector<16x16x128xf32>
    %c30 = arith.constant 30 : index
    %104 = memref.load %arg1[%c30] : memref<36xf32, #tpu.memory_space<smem>>
    %c1_82 = arith.constant 1 : index
    %c0_83 = arith.constant 0 : index
    %c0_84 = arith.constant 0 : index
    %105 = vector.load %arg5[%c1_82, %c0_83, %c0_84] : memref<18x18x128xf32, #tpu.memory_space<vmem>>, vector<16x16x128xf32>
    %106 = vector.broadcast %104 : f32 to vector<16x16x128xf32>
    %107 = arith.mulf %106, %105 : vector<16x16x128xf32>
    %108 = arith.addf %103, %107 : vector<16x16x128xf32>
    %c31 = arith.constant 31 : index
    %109 = memref.load %arg1[%c31] : memref<36xf32, #tpu.memory_space<smem>>
    %c1_85 = arith.constant 1 : index
    %c1_86 = arith.constant 1 : index
    %c0_87 = arith.constant 0 : index
    %110 = vector.load %arg5[%c1_85, %c1_86, %c0_87] : memref<18x18x128xf32, #tpu.memory_space<vmem>>, vector<16x16x128xf32>
    %111 = vector.broadcast %109 : f32 to vector<16x16x128xf32>
    %112 = arith.mulf %111, %110 : vector<16x16x128xf32>
    %113 = arith.addf %108, %112 : vector<16x16x128xf32>
    %c0_88 = arith.constant 0 : index
    %c0_89 = arith.constant 0 : index
    %c0_90 = arith.constant 0 : index
    %114 = vector.load %arg4[%c0_88, %c0_89, %c0_90] : memref<16x16x128xf32, #tpu.memory_space<vmem>>, vector<16x16x128xf32>
    tpu.vector_store %arg4[%c0_88, %c0_89, %c0_90], %113 {strides = array<i32>} : memref<16x16x128xf32, #tpu.memory_space<vmem>>, vector<16x16x128xf32>,
    return
  }
  func.func @transform_0(%arg0: i32) -> i32 {
    %c0_i32 = arith.constant 0 : i32
    %c0_i32_0 = arith.constant 0 : i32
    return %c0_i32 : i32
  }
  func.func @transform_1(%arg0: i32) -> i32 {
    %c0_i32 = arith.constant 0 : i32
    %c0_i32_0 = arith.constant 0 : i32
    return %c0_i32 : i32
  }
  func.func @transform_2(%arg0: i32) -> (i32, i32, i32) {
    %c0_i32 = arith.constant 0 : i32
    %c0_i32_0 = arith.constant 0 : i32
    %c0_i32_1 = arith.constant 0 : i32
    return %c0_i32, %c0_i32_0, %arg0 : i32, i32, i32
  }
  func.func @transform_3(%arg0: i32) -> (i32, i32, i32) {
    %c0_i32 = arith.constant 0 : i32
    %c0_i32_0 = arith.constant 0 : i32
    %c0_i32_1 = arith.constant 0 : i32
    return %c0_i32, %c0_i32_0, %arg0 : i32, i32, i32
  }
}

</mosaic_0001>

<llo_original>
// kernel: tpu_custom_call.1
$region0: #{tpu_custom_call.1}
  #allocation0 [shape = 'u32[]', space=smem, size = 0x4, offset = 0x4, fixed_abs, tag = 'smem constant byte address 0x4 - core index']
  #allocation1 [shape = 'u32[144,128]{1,0:T(1,128)}', space=vmem, size = 0x12000, scoped, tag = 'internal scratch']
  #allocation2 [shape = 'f32[18,18,128]{2,1,0:T(8,128)}', space=vmem, size = 0x36000, scoped, tag = 'scratch operand']
  %s0 = inlined_call_operand.hbm [shape: f32[36], index: 0, kind: input, shape index: {}]
  %s1 = inlined_call_operand.vmem [shape: f32[4], index: 1, kind: input, shape index: {}]
  %s2 = inlined_call_operand.hbm [shape: f32[16,16,128], index: 2, kind: input, shape index: {}]
  %s3 = inlined_call_operand.hbm [shape: f32[16,16,128], index: 3, kind: output, shape index: {}]
  %s4 = sld [smem:[#allocation0]]
  $region34: #{tpu_custom_call.1} parent=0
    _
  %s6 = ssub.s32 1, %s4
  %s7 = scalar_select 0, %s6, %s4
  $region1: #{tpu_custom_call.1} parent=0
    #allocation3 [shape = 'u8[512]{0}', space=smem, size = 0x200, scoped, tag = 'input window, operand 0, single buffered']
    #allocation4 [shape = 's32[1]{0}', space=sflag, size = 0x4, scoped, tag = 'scoped memory for tpu_custom_call.1']
    #allocation5 [shape = 's32[1]{0}', space=sflag, size = 0x4, scoped, tag = 'scoped memory for tpu_custom_call.1']
    #allocation6 [shape = 's32[1]{0}', space=sflag, size = 0x4, scoped, tag = 'scoped memory for tpu_custom_call.1']
    #allocation7 [shape = 's32[1]{0}', space=sflag, size = 0x4, scoped, tag = 'scoped memory for tpu_custom_call.1']
    #allocation8 [shape = 'u8[512]{0}', space=smem, size = 0x200, scoped, tag = 'input window, operand 1, single buffered']
    #allocation9 [shape = 'u8[131072]{0}', space=vmem, size = 0x20000, scoped, tag = 'input window, operand 2, single buffered']
    #allocation10 [shape = 'u8[131072]{0}', space=vmem, size = 0x20000, scoped, tag = 'output window, operand 0, single buffered']
    %8 = vsyncpa [#allocation6], 0
    %9 = vsyncpa [#allocation7], 0
    %10 = vsyncpa [#allocation4], 0
    %11 = vsyncpa [#allocation5], 0
    // Predicated region
    $region2: #{tpu_custom_call.1} parent=1 // pred_check
      _
    $region3: #{tpu_custom_call.1} parent=1 // pred_check_branch
      %13 = sbr.rel (0) target = $region5
    $region4: #{tpu_custom_call.1} parent=1 // pred_region
      %s15 = ssub.s32 16, 16
      %16 = vsyncadd [#allocation6], %s15
      %19 = dma.hbm_to_smem %s0, 16, [#allocation3], [#allocation6]
    $region5: #{tpu_custom_call.1} parent=1 // pred_fallthru
      _
    // Predicated region
    $region6: #{tpu_custom_call.1} parent=1 // pred_check
      _
    $region7: #{tpu_custom_call.1} parent=1 // pred_check_branch
      %21 = sbr.rel (0) target = $region9
    $region8: #{tpu_custom_call.1} parent=1 // pred_region
      %s23 = ssub.s32 16, 16
      %24 = vsyncadd [#allocation7], %s23
      %s26 = sshll.u32 %s1, 4
      %s27 = int_to_ptr.vmem [resolvable:$true] %s26
      %29 = dma.vmem_to_smem %s27, 16, [#allocation8], [#allocation7]
    $region9: #{tpu_custom_call.1} parent=1 // pred_fallthru
      _
    // Predicated region
    $region10: #{tpu_custom_call.1} parent=1 // pred_check
      _
    $region11: #{tpu_custom_call.1} parent=1 // pred_check_branch
      %31 = sbr.rel (0) target = $region13
    $region12: #{tpu_custom_call.1} parent=1 // pred_region
      %s33 = ssub.s32 4096, 4096
      %34 = vsyncadd [#allocation4], %s33
      %s35 = sshll.u32 [#allocation9], 4
      %s36 = int_to_ptr.vmem [resolvable:$true] %s35
      %41 = dma.hbm_to_vmem [thread:$0]  %s2, 4096, %s36, [#allocation4], 128, 128, 8
    $region13: #{tpu_custom_call.1} parent=1 // pred_fallthru
      _
    // Predicated region
    $region14: #{tpu_custom_call.1} parent=1 // pred_check
      _
    $region15: #{tpu_custom_call.1} parent=1 // pred_check_branch
      %43 = sbr.rel (0) target = $region17
    $region16: #{tpu_custom_call.1} parent=1 // pred_region
      %44 = dma.done [#allocation6], 16
    $region17: #{tpu_custom_call.1} parent=1 // pred_fallthru
      _
    // Predicated region
    $region18: #{tpu_custom_call.1} parent=1 // pred_check
      _
    $region19: #{tpu_custom_call.1} parent=1 // pred_check_branch
      %46 = sbr.rel (0) target = $region21
    $region20: #{tpu_custom_call.1} parent=1 // pred_region
      %47 = dma.done [#allocation7], 16
    $region21: #{tpu_custom_call.1} parent=1 // pred_fallthru
      _
    // Predicated region
    $region22: #{tpu_custom_call.1} parent=1 // pred_check
      _
    $region23: #{tpu_custom_call.1} parent=1 // pred_check_branch
      %49 = sbr.rel (0) target = $region25
    $region24: #{tpu_custom_call.1} parent=1 // pred_region
      %50 = dma.done [#allocation4], 4096
    $region25: #{tpu_custom_call.1} parent=1 // pred_fallthru
      _
    %51 = sfence
    %52 = vst [vmem:[#allocation2] sm:$0xff] 0.0
    %53 = vst [vmem:[#allocation2 + $0x8] sm:$0xff] 0.0
    %54 = vst [vmem:[#allocation2 + $0x10] sm:$0x3] 0.0
    %s55 = scalar_lea.vmem [#allocation2], 408
    %56 = vst [vmem:[%s55] sm:$0xff] 0.0
    %57 = vst [vmem:[%s55 + $0x8] sm:$0xff] 0.0
    %58 = vst [vmem:[%s55 + $0x10] sm:$0x3] 0.0
    %59 = vst [vmem:[#allocation2] sm:$0x1] 0.0
    %60 = vst [vmem:[#allocation2 + $0x18] sm:$0x1] 0.0
    %61 = vst [vmem:[#allocation2 + $0x30] sm:$0x1] 0.0
    %62 = vst [vmem:[#allocation2 + $0x48] sm:$0x1] 0.0
    %63 = vst [vmem:[#allocation2 + $0x60] sm:$0x1] 0.0
    %64 = vst [vmem:[#allocation2 + $0x78] sm:$0x1] 0.0
    %65 = vst [vmem:[#allocation2 + $0x90] sm:$0x1] 0.0
    %66 = vst [vmem:[#allocation2 + $0xa8] sm:$0x1] 0.0
    %67 = vst [vmem:[#allocation2 + $0xc0] sm:$0x1] 0.0
    %68 = vst [vmem:[#allocation2 + $0xd8] sm:$0x1] 0.0
    %69 = vst [vmem:[#allocation2 + $0xf0] sm:$0x1] 0.0
    %70 = vst [vmem:[#allocation2 + $0x108] sm:$0x1] 0.0
    %71 = vst [vmem:[#allocation2 + $0x120] sm:$0x1] 0.0
    %72 = vst [vmem:[#allocation2 + $0x138] sm:$0x1] 0.0
    %73 = vst [vmem:[#allocation2 + $0x150] sm:$0x1] 0.0
    %74 = vst [vmem:[#allocation2 + $0x168] sm:$0x1] 0.0
    %75 = vst [vmem:[#allocation2 + $0x180] sm:$0x1] 0.0
    %76 = vst [vmem:[#allocation2 + $0x198] sm:$0x1] 0.0
    %77 = vst [vmem:[#allocation2 + $0x11] sm:$0x1] 0.0
    %78 = vst [vmem:[#allocation2 + $0x29] sm:$0x1] 0.0
    %79 = vst [vmem:[#allocation2 + $0x41] sm:$0x1] 0.0
    %80 = vst [vmem:[#allocation2 + $0x59] sm:$0x1] 0.0
    %81 = vst [vmem:[#allocation2 + $0x71] sm:$0x1] 0.0
    %82 = vst [vmem:[#allocation2 + $0x89] sm:$0x1] 0.0
    %83 = vst [vmem:[#allocation2 + $0xa1] sm:$0x1] 0.0
    %84 = vst [vmem:[#allocation2 + $0xb9] sm:$0x1] 0.0
    %85 = vst [vmem:[#allocation2 + $0xd1] sm:$0x1] 0.0
    %86 = vst [vmem:[#allocation2 + $0xe9] sm:$0x1] 0.0
    %87 = vst [vmem:[#allocation2 + $0x101] sm:$0x1] 0.0
    %88 = vst [vmem:[#allocation2 + $0x119] sm:$0x1] 0.0
    %89 = vst [vmem:[#allocation2 + $0x131] sm:$0x1] 0.0
    %90 = vst [vmem:[#allocation2 + $0x149] sm:$0x1] 0.0
    %91 = vst [vmem:[#allocation2 + $0x161] sm:$0x1] 0.0
    %92 = vst [vmem:[#allocation2 + $0x179] sm:$0x1] 0.0
    %93 = vst [vmem:[#allocation2 + $0x191] sm:$0x1] 0.0
    %94 = vst [vmem:[#allocation2 + $0x1a9] sm:$0x1] 0.0
    %v95 = vld [vmem:[#allocation9] sm:$0xff]
    %v96 = vld [vmem:[#allocation9 + $0x8] sm:$0xff]
    %v97 = vld [vmem:[#allocation9 + $0x10] sm:$0xff]
    %v98 = vld [vmem:[#allocation9 + $0x18] sm:$0xff]
    %v99 = vld [vmem:[#allocation9 + $0x20] sm:$0xff]
    %v100 = vld [vmem:[#allocation9 + $0x28] sm:$0xff]
    %v101 = vld [vmem:[#allocation9 + $0x30] sm:$0xff]
    %v102 = vld [vmem:[#allocation9 + $0x38] sm:$0xff]
    %v103 = vld [vmem:[#allocation9 + $0x40] sm:$0xff]
    %v104 = vld [vmem:[#allocation9 + $0x48] sm:$0xff]
    %v105 = vld [vmem:[#allocation9 + $0x50] sm:$0xff]
    %v106 = vld [vmem:[#allocation9 + $0x58] sm:$0xff]
    %v107 = vld [vmem:[#allocation9 + $0x60] sm:$0xff]
    %v108 = vld [vmem:[#allocation9 + $0x68] sm:$0xff]
    %v109 = vld [vmem:[#allocation9 + $0x70] sm:$0xff]
    %v110 = vld [vmem:[#allocation9 + $0x78] sm:$0xff]
    %v111 = vld [vmem:[#allocation9 + $0x80] sm:$0xff]
    %v112 = vld [vmem:[#allocation9 + $0x88] sm:$0xff]
    %v113 = vld [vmem:[#allocation9 + $0x90] sm:$0xff]
    %v114 = vld [vmem:[#allocation9 + $0x98] sm:$0xff]
    %v115 = vld [vmem:[#allocation9 + $0xa0] sm:$0xff]
    %v116 = vld [vmem:[#allocation9 + $0xa8] sm:$0xff]
    %v117 = vld [vmem:[#allocation9 + $0xb0] sm:$0xff]
    %v118 = vld [vmem:[#allocation9 + $0xb8] sm:$0xff]
    %v119 = vld [vmem:[#allocation9 + $0xc0] sm:$0xff]
    %v120 = vld [vmem:[#allocation9 + $0xc8] sm:$0xff]
    %v121 = vld [vmem:[#allocation9 + $0xd0] sm:$0xff]
    %v122 = vld [vmem:[#allocation9 + $0xd8] sm:$0xff]
    %v123 = vld [vmem:[#allocation9 + $0xe0] sm:$0xff]
    %v124 = vld [vmem:[#allocation9 + $0xe8] sm:$0xff]
    %v125 = vld [vmem:[#allocation9 + $0xf0] sm:$0xff]
    %v126 = vld [vmem:[#allocation9 + $0xf8] sm:$0xff]
    %s127 = scalar_lea.vmem [#allocation2], 24
    %128 = vst [vmem:[%s127 + $0x1] sm:$0xff] %v95
    %129 = vst [vmem:[%s127 + $0x9] sm:$0xff] %v96
    %130 = vst [vmem:[%s127 + $0x19] sm:$0xff] %v97
    %131 = vst [vmem:[%s127 + $0x21] sm:$0xff] %v98
    %132 = vst [vmem:[%s127 + $0x31] sm:$0xff] %v99
    %133 = vst [vmem:[%s127 + $0x39] sm:$0xff] %v100
    %134 = vst [vmem:[%s127 + $0x49] sm:$0xff] %v101
    %135 = vst [vmem:[%s127 + $0x51] sm:$0xff] %v102
    %136 = vst [vmem:[%s127 + $0x61] sm:$0xff] %v103
    %137 = vst [vmem:[%s127 + $0x69] sm:$0xff] %v104
    %138 = vst [vmem:[%s127 + $0x79] sm:$0xff] %v105
    %139 = vst [vmem:[%s127 + $0x81] sm:$0xff] %v106
    %140 = vst [vmem:[%s127 + $0x91] sm:$0xff] %v107
    %141 = vst [vmem:[%s127 + $0x99] sm:$0xff] %v108
    %142 = vst [vmem:[%s127 + $0xa9] sm:$0xff] %v109
    %143 = vst [vmem:[%s127 + $0xb1] sm:$0xff] %v110
    %144 = vst [vmem:[%s127 + $0xc1] sm:$0xff] %v111
    %145 = vst [vmem:[%s127 + $0xc9] sm:$0xff] %v112
    %146 = vst [vmem:[%s127 + $0xd9] sm:$0xff] %v113
    %147 = vst [vmem:[%s127 + $0xe1] sm:$0xff] %v114
    %148 = vst [vmem:[%s127 + $0xf1] sm:$0xff] %v115
    %149 = vst [vmem:[%s127 + $0xf9] sm:$0xff] %v116
    %150 = vst [vmem:[%s127 + $0x109] sm:$0xff] %v117
    %151 = vst [vmem:[%s127 + $0x111] sm:$0xff] %v118
    %152 = vst [vmem:[%s127 + $0x121] sm:$0xff] %v119
    %153 = vst [vmem:[%s127 + $0x129] sm:$0xff] %v120
    %154 = vst [vmem:[%s127 + $0x139] sm:$0xff] %v121
    %155 = vst [vmem:[%s127 + $0x141] sm:$0xff] %v122
    %156 = vst [vmem:[%s127 + $0x151] sm:$0xff] %v123
    %157 = vst [vmem:[%s127 + $0x159] sm:$0xff] %v124
    %158 = vst [vmem:[%s127 + $0x169] sm:$0xff] %v125
    %159 = vst [vmem:[%s127 + $0x171] sm:$0xff] %v126
    %s160 = sld [smem:[#allocation3]]
    %v161 = vld [vmem:[#allocation2] sm:$0xff]
    %v162 = vld [vmem:[#allocation2 + $0x8] sm:$0xff]
    %v163 = vld [vmem:[#allocation2 + $0x18] sm:$0xff]
    %v164 = vld [vmem:[#allocation2 + $0x20] sm:$0xff]
    %v165 = vld [vmem:[#allocation2 + $0x30] sm:$0xff]
    %v166 = vld [vmem:[#allocation2 + $0x38] sm:$0xff]
    %v167 = vld [vmem:[#allocation2 + $0x48] sm:$0xff]
    %v168 = vld [vmem:[#allocation2 + $0x50] sm:$0xff]
    %v169 = vld [vmem:[#allocation2 + $0x60] sm:$0xff]
    %v170 = vld [vmem:[#allocation2 + $0x68] sm:$0xff]
    %v171 = vld [vmem:[#allocation2 + $0x78] sm:$0xff]
    %v172 = vld [vmem:[#allocation2 + $0x80] sm:$0xff]
    %v173 = vld [vmem:[#allocation2 + $0x90] sm:$0xff]
    %v174 = vld [vmem:[#allocation2 + $0x98] sm:$0xff]
    %v175 = vld [vmem:[#allocation2 + $0xa8] sm:$0xff]
    %v176 = vld [vmem:[#allocation2 + $0xb0] sm:$0xff]
    %v177 = vld [vmem:[#allocation2 + $0xc0] sm:$0xff]
    %v178 = vld [vmem:[#allocation2 + $0xc8] sm:$0xff]
    %v179 = vld [vmem:[#allocation2 + $0xd8] sm:$0xff]
    %v180 = vld [vmem:[#allocation2 + $0xe0] sm:$0xff]
    %v181 = vld [vmem:[#allocation2 + $0xf0] sm:$0xff]
    %v182 = vld [vmem:[#allocation2 + $0xf8] sm:$0xff]
    %v183 = vld [vmem:[#allocation2 + $0x108] sm:$0xff]
    %v184 = vld [vmem:[#allocation2 + $0x110] sm:$0xff]
    %v185 = vld [vmem:[#allocation2 + $0x120] sm:$0xff]
    %v186 = vld [vmem:[#allocation2 + $0x128] sm:$0xff]
    %v187 = vld [vmem:[#allocation2 + $0x138] sm:$0xff]
    %v188 = vld [vmem:[#allocation2 + $0x140] sm:$0xff]
    %v189 = vld [vmem:[#allocation2 + $0x150] sm:$0xff]
    %v190 = vld [vmem:[#allocation2 + $0x158] sm:$0xff]
    %v191 = vld [vmem:[#allocation2 + $0x168] sm:$0xff]
    %v192 = vld [vmem:[#allocation2 + $0x170] sm:$0xff]
    %v193 = vstv %s160
    %v194 = vmul.f32 %v193, %v161
    %v195 = vmul.f32 %v193, %v162
    %v196 = vmul.f32 %v193, %v163
    %v197 = vmul.f32 %v193, %v164
    %v198 = vmul.f32 %v193, %v165
    %v199 = vmul.f32 %v193, %v166
    %v200 = vmul.f32 %v193, %v167
    %v201 = vmul.f32 %v193, %v168
    %v202 = vmul.f32 %v193, %v169
    %v203 = vmul.f32 %v193, %v170
    %v204 = vmul.f32 %v193, %v171
    %v205 = vmul.f32 %v193, %v172
    %v206 = vmul.f32 %v193, %v173
    %v207 = vmul.f32 %v193, %v174
    %v208 = vmul.f32 %v193, %v175
    %v209 = vmul.f32 %v193, %v176
    %v210 = vmul.f32 %v193, %v177
    %v211 = vmul.f32 %v193, %v178
    %v212 = vmul.f32 %v193, %v179
    %v213 = vmul.f32 %v193, %v180
    %v214 = vmul.f32 %v193, %v181
    %v215 = vmul.f32 %v193, %v182
    %v216 = vmul.f32 %v193, %v183
    %v217 = vmul.f32 %v193, %v184
    %v218 = vmul.f32 %v193, %v185
    %v219 = vmul.f32 %v193, %v186
    %v220 = vmul.f32 %v193, %v187
    %v221 = vmul.f32 %v193, %v188
    %v222 = vmul.f32 %v193, %v189
    %v223 = vmul.f32 %v193, %v190
    %v224 = vmul.f32 %v193, %v191
    %v225 = vmul.f32 %v193, %v192
    %s226 = sld [smem:[#allocation8]]
    %v227 = vstv %s226
    %v228 = vadd.f32 %v194, %v227
    %v229 = vadd.f32 %v195, %v227
    %v230 = vadd.f32 %v196, %v227
    %v231 = vadd.f32 %v197, %v227
    %v232 = vadd.f32 %v198, %v227
    %v233 = vadd.f32 %v199, %v227
    %v234 = vadd.f32 %v200, %v227
    %v235 = vadd.f32 %v201, %v227
    %v236 = vadd.f32 %v202, %v227
    %v237 = vadd.f32 %v203, %v227
    %v238 = vadd.f32 %v204, %v227
    %v239 = vadd.f32 %v205, %v227
    %v240 = vadd.f32 %v206, %v227
    %v241 = vadd.f32 %v207, %v227
    %v242 = vadd.f32 %v208, %v227
    %v243 = vadd.f32 %v209, %v227
    %v244 = vadd.f32 %v210, %v227
    %v245 = vadd.f32 %v211, %v227
    %v246 = vadd.f32 %v212, %v227
    %v247 = vadd.f32 %v213, %v227
    %v248 = vadd.f32 %v214, %v227
    %v249 = vadd.f32 %v215, %v227
    %v250 = vadd.f32 %v216, %v227
    %v251 = vadd.f32 %v217, %v227
    %v252 = vadd.f32 %v218, %v227
    %v253 = vadd.f32 %v219, %v227
    %v254 = vadd.f32 %v220, %v227
    %v255 = vadd.f32 %v221, %v227
    %v256 = vadd.f32 %v222, %v227
    %v257 = vadd.f32 %v223, %v227
    %v258 = vadd.f32 %v224, %v227
    %v259 = vadd.f32 %v225, %v227
    %s260 = sld [smem:[#allocation3 + $0x1]]
    %v261 = vld [vmem:[#allocation2 + $0x1] sm:$0xff]
    %v262 = vld [vmem:[#allocation2 + $0x9] sm:$0xff]
    %v263 = vld [vmem:[#allocation2 + $0x19] sm:$0xff]
    %v264 = vld [vmem:[#allocation2 + $0x21] sm:$0xff]
    %v265 = vld [vmem:[#allocation2 + $0x31] sm:$0xff]
    %v266 = vld [vmem:[#allocation2 + $0x39] sm:$0xff]
    %v267 = vld [vmem:[#allocation2 + $0x49] sm:$0xff]
    %v268 = vld [vmem:[#allocation2 + $0x51] sm:$0xff]
    %v269 = vld [vmem:[#allocation2 + $0x61] sm:$0xff]
    %v270 = vld [vmem:[#allocation2 + $0x69] sm:$0xff]
    %v271 = vld [vmem:[#allocation2 + $0x79] sm:$0xff]
    %v272 = vld [vmem:[#allocation2 + $0x81] sm:$0xff]
    %v273 = vld [vmem:[#allocation2 + $0x91] sm:$0xff]
    %v274 = vld [vmem:[#allocation2 + $0x99] sm:$0xff]
    %v275 = vld [vmem:[#allocation2 + $0xa9] sm:$0xff]
    %v276 = vld [vmem:[#allocation2 + $0xb1] sm:$0xff]
    %v277 = vld [vmem:[#allocation2 + $0xc1] sm:$0xff]
    %v278 = vld [vmem:[#allocation2 + $0xc9] sm:$0xff]
    %v279 = vld [vmem:[#allocation2 + $0xd9] sm:$0xff]
    %v280 = vld [vmem:[#allocation2 + $0xe1] sm:$0xff]
    %v281 = vld [vmem:[#allocation2 + $0xf1] sm:$0xff]
    %v282 = vld [vmem:[#allocation2 + $0xf9] sm:$0xff]
    %v283 = vld [vmem:[#allocation2 + $0x109] sm:$0xff]
    %v284 = vld [vmem:[#allocation2 + $0x111] sm:$0xff]
    %v285 = vld [vmem:[#allocation2 + $0x121] sm:$0xff]
    %v286 = vld [vmem:[#allocation2 + $0x129] sm:$0xff]
    %v287 = vld [vmem:[#allocation2 + $0x139] sm:$0xff]
    %v288 = vld [vmem:[#allocation2 + $0x141] sm:$0xff]
    %v289 = vld [vmem:[#allocation2 + $0x151] sm:$0xff]
    %v290 = vld [vmem:[#allocation2 + $0x159] sm:$0xff]
    %v291 = vld [vmem:[#allocation2 + $0x169] sm:$0xff]
    %v292 = vld [vmem:[#allocation2 + $0x171] sm:$0xff]
    %v293 = vstv %s260
    %v294 = vmul.f32 %v293, %v261
    %v295 = vmul.f32 %v293, %v262
    %v296 = vmul.f32 %v293, %v263
    %v297 = vmul.f32 %v293, %v264
    %v298 = vmul.f32 %v293, %v265
    %v299 = vmul.f32 %v293, %v266
    %v300 = vmul.f32 %v293, %v267
    %v301 = vmul.f32 %v293, %v268
    %v302 = vmul.f32 %v293, %v269
    %v303 = vmul.f32 %v293, %v270
    %v304 = vmul.f32 %v293, %v271
    %v305 = vmul.f32 %v293, %v272
    %v306 = vmul.f32 %v293, %v273
    %v307 = vmul.f32 %v293, %v274
    %v308 = vmul.f32 %v293, %v275
    %v309 = vmul.f32 %v293, %v276
    %v310 = vmul.f32 %v293, %v277
    %v311 = vmul.f32 %v293, %v278
    %v312 = vmul.f32 %v293, %v279
    %v313 = vmul.f32 %v293, %v280
    %v314 = vmul.f32 %v293, %v281
    %v315 = vmul.f32 %v293, %v282
    %v316 = vmul.f32 %v293, %v283
    %v317 = vmul.f32 %v293, %v284
    %v318 = vmul.f32 %v293, %v285
    %v319 = vmul.f32 %v293, %v286
    %v320 = vmul.f32 %v293, %v287
    %v321 = vmul.f32 %v293, %v288
    %v322 = vmul.f32 %v293, %v289
    %v323 = vmul.f32 %v293, %v290
    %v324 = vmul.f32 %v293, %v291
    %v325 = vmul.f32 %v293, %v292
    %v326 = vadd.f32 %v228, %v294
    %v327 = vadd.f32 %v229, %v295
    %v328 = vadd.f32 %v230, %v296
    %v329 = vadd.f32 %v231, %v297
    %v330 = vadd.f32 %v232, %v298
    %v331 = vadd.f32 %v233, %v299
    %v332 = vadd.f32 %v234, %v300
    %v333 = vadd.f32 %v235, %v301
    %v334 = vadd.f32 %v236, %v302
    %v335 = vadd.f32 %v237, %v303
    %v336 = vadd.f32 %v238, %v304
    %v337 = vadd.f32 %v239, %v305
    %v338 = vadd.f32 %v240, %v306
    %v339 = vadd.f32 %v241, %v307
    %v340 = vadd.f32 %v242, %v308
    %v341 = vadd.f32 %v243, %v309
    %v342 = vadd.f32 %v244, %v310
    %v343 = vadd.f32 %v245, %v311
    %v344 = vadd.f32 %v246, %v312
    %v345 = vadd.f32 %v247, %v313
    %v346 = vadd.f32 %v248, %v314
    %v347 = vadd.f32 %v249, %v315
    %v348 = vadd.f32 %v250, %v316
    %v349 = vadd.f32 %v251, %v317
    %v350 = vadd.f32 %v252, %v318
    %v351 = vadd.f32 %v253, %v319
    %v352 = vadd.f32 %v254, %v320
    %v353 = vadd.f32 %v255, %v321
    %v354 = vadd.f32 %v256, %v322
    %v355 = vadd.f32 %v257, %v323
    %v356 = vadd.f32 %v258, %v324
    %v357 = vadd.f32 %v259, %v325
    %s358 = sld [smem:[#allocation3 + $0x2]]
    %v359 = vld [vmem:[#allocation2 + $0x2] sm:$0xff]
    %v360 = vld [vmem:[#allocation2 + $0xa] sm:$0xff]
    %v361 = vld [vmem:[#allocation2 + $0x1a] sm:$0xff]
    %v362 = vld [vmem:[#allocation2 + $0x22] sm:$0xff]
    %v363 = vld [vmem:[#allocation2 + $0x32] sm:$0xff]
    %v364 = vld [vmem:[#allocation2 + $0x3a] sm:$0xff]
    %v365 = vld [vmem:[#allocation2 + $0x4a] sm:$0xff]
    %v366 = vld [vmem:[#allocation2 + $0x52] sm:$0xff]
    %v367 = vld [vmem:[#allocation2 + $0x62] sm:$0xff]
    %v368 = vld [vmem:[#allocation2 + $0x6a] sm:$0xff]
    %v369 = vld [vmem:[#allocation2 + $0x7a] sm:$0xff]
    %v370 = vld [vmem:[#allocation2 + $0x82] sm:$0xff]
    %v371 = vld [vmem:[#allocation2 + $0x92] sm:$0xff]
    %v372 = vld [vmem:[#allocation2 + $0x9a] sm:$0xff]
    %v373 = vld [vmem:[#allocation2 + $0xaa] sm:$0xff]
    %v374 = vld [vmem:[#allocation2 + $0xb2] sm:$0xff]
    %v375 = vld [vmem:[#allocation2 + $0xc2] sm:$0xff]
    %v376 = vld [vmem:[#allocation2 + $0xca] sm:$0xff]
    %v377 = vld [vmem:[#allocation2 + $0xda] sm:$0xff]
    %v378 = vld [vmem:[#allocation2 + $0xe2] sm:$0xff]
    %v379 = vld [vmem:[#allocation2 + $0xf2] sm:$0xff]
    %v380 = vld [vmem:[#allocation2 + $0xfa] sm:$0xff]
    %v381 = vld [vmem:[#allocation2 + $0x10a] sm:$0xff]
    %v382 = vld [vmem:[#allocation2 + $0x112] sm:$0xff]
    %v383 = vld [vmem:[#allocation2 + $0x122] sm:$0xff]
    %v384 = vld [vmem:[#allocation2 + $0x12a] sm:$0xff]
    %v385 = vld [vmem:[#allocation2 + $0x13a] sm:$0xff]
    %v386 = vld [vmem:[#allocation2 + $0x142] sm:$0xff]
    %v387 = vld [vmem:[#allocation2 + $0x152] sm:$0xff]
    %v388 = vld [vmem:[#allocation2 + $0x15a] sm:$0xff]
    %v389 = vld [vmem:[#allocation2 + $0x16a] sm:$0xff]
    %v390 = vld [vmem:[#allocation2 + $0x172] sm:$0xff]
    %v391 = vstv %s358
    %v392 = vmul.f32 %v391, %v359
    %v393 = vmul.f32 %v391, %v360
    %v394 = vmul.f32 %v391, %v361
    %v395 = vmul.f32 %v391, %v362
    %v396 = vmul.f32 %v391, %v363
    %v397 = vmul.f32 %v391, %v364
    %v398 = vmul.f32 %v391, %v365
    %v399 = vmul.f32 %v391, %v366
    %v400 = vmul.f32 %v391, %v367
    %v401 = vmul.f32 %v391, %v368
    %v402 = vmul.f32 %v391, %v369
    %v403 = vmul.f32 %v391, %v370
    %v404 = vmul.f32 %v391, %v371
    %v405 = vmul.f32 %v391, %v372
    %v406 = vmul.f32 %v391, %v373
    %v407 = vmul.f32 %v391, %v374
    %v408 = vmul.f32 %v391, %v375
    %v409 = vmul.f32 %v391, %v376
    %v410 = vmul.f32 %v391, %v377
    %v411 = vmul.f32 %v391, %v378
    %v412 = vmul.f32 %v391, %v379
    %v413 = vmul.f32 %v391, %v380
    %v414 = vmul.f32 %v391, %v381
    %v415 = vmul.f32 %v391, %v382
    %v416 = vmul.f32 %v391, %v383
    %v417 = vmul.f32 %v391, %v384
    %v418 = vmul.f32 %v391, %v385
    %v419 = vmul.f32 %v391, %v386
    %v420 = vmul.f32 %v391, %v387
    %v421 = vmul.f32 %v391, %v388
    %v422 = vmul.f32 %v391, %v389
    %v423 = vmul.f32 %v391, %v390
    %v424 = vadd.f32 %v326, %v392
    %v425 = vadd.f32 %v327, %v393
    %v426 = vadd.f32 %v328, %v394
    %v427 = vadd.f32 %v329, %v395
    %v428 = vadd.f32 %v330, %v396
    %v429 = vadd.f32 %v331, %v397
    %v430 = vadd.f32 %v332, %v398
    %v431 = vadd.f32 %v333, %v399
    %v432 = vadd.f32 %v334, %v400
    %v433 = vadd.f32 %v335, %v401
    %v434 = vadd.f32 %v336, %v402
    %v435 = vadd.f32 %v337, %v403
    %v436 = vadd.f32 %v338, %v404
    %v437 = vadd.f32 %v339, %v405
    %v438 = vadd.f32 %v340, %v406
    %v439 = vadd.f32 %v341, %v407
    %v440 = vadd.f32 %v342, %v408
    %v441 = vadd.f32 %v343, %v409
    %v442 = vadd.f32 %v344, %v410
    %v443 = vadd.f32 %v345, %v411
    %v444 = vadd.f32 %v346, %v412
    %v445 = vadd.f32 %v347, %v413
    %v446 = vadd.f32 %v348, %v414
    %v447 = vadd.f32 %v349, %v415
    %v448 = vadd.f32 %v350, %v416
    %v449 = vadd.f32 %v351, %v417
    %v450 = vadd.f32 %v352, %v418
    %v451 = vadd.f32 %v353, %v419
    %v452 = vadd.f32 %v354, %v420
    %v453 = vadd.f32 %v355, %v421
    %v454 = vadd.f32 %v356, %v422
    %v455 = vadd.f32 %v357, %v423
    %s456 = sld [smem:[#allocation3 + $0x3]]
    %v457 = vld [vmem:[%s127] sm:$0xff]
    %v458 = vld [vmem:[%s127 + $0x8] sm:$0xff]
    %v459 = vld [vmem:[%s127 + $0x18] sm:$0xff]
    %v460 = vld [vmem:[%s127 + $0x20] sm:$0xff]
    %v461 = vld [vmem:[%s127 + $0x30] sm:$0xff]
    %v462 = vld [vmem:[%s127 + $0x38] sm:$0xff]
    %v463 = vld [vmem:[%s127 + $0x48] sm:$0xff]
    %v464 = vld [vmem:[%s127 + $0x50] sm:$0xff]
    %v465 = vld [vmem:[%s127 + $0x60] sm:$0xff]
    %v466 = vld [vmem:[%s127 + $0x68] sm:$0xff]
    %v467 = vld [vmem:[%s127 + $0x78] sm:$0xff]
    %v468 = vld [vmem:[%s127 + $0x80] sm:$0xff]
    %v469 = vld [vmem:[%s127 + $0x90] sm:$0xff]
    %v470 = vld [vmem:[%s127 + $0x98] sm:$0xff]
    %v471 = vld [vmem:[%s127 + $0xa8] sm:$0xff]
    %v472 = vld [vmem:[%s127 + $0xb0] sm:$0xff]
    %v473 = vld [vmem:[%s127 + $0xc0] sm:$0xff]
    %v474 = vld [vmem:[%s127 + $0xc8] sm:$0xff]
    %v475 = vld [vmem:[%s127 + $0xd8] sm:$0xff]
    %v476 = vld [vmem:[%s127 + $0xe0] sm:$0xff]
    %v477 = vld [vmem:[%s127 + $0xf0] sm:$0xff]
    %v478 = vld [vmem:[%s127 + $0xf8] sm:$0xff]
    %v479 = vld [vmem:[%s127 + $0x108] sm:$0xff]
    %v480 = vld [vmem:[%s127 + $0x110] sm:$0xff]
    %v481 = vld [vmem:[%s127 + $0x120] sm:$0xff]
    %v482 = vld [vmem:[%s127 + $0x128] sm:$0xff]
    %v483 = vld [vmem:[%s127 + $0x138] sm:$0xff]
    %v484 = vld [vmem:[%s127 + $0x140] sm:$0xff]
    %v485 = vld [vmem:[%s127 + $0x150] sm:$0xff]
    %v486 = vld [vmem:[%s127 + $0x158] sm:$0xff]
    %v487 = vld [vmem:[%s127 + $0x168] sm:$0xff]
    %v488 = vld [vmem:[%s127 + $0x170] sm:$0xff]
    %v489 = vstv %s456
    %v490 = vmul.f32 %v489, %v457
    %v491 = vmul.f32 %v489, %v458
    %v492 = vmul.f32 %v489, %v459
    %v493 = vmul.f32 %v489, %v460
    %v494 = vmul.f32 %v489, %v461
    %v495 = vmul.f32 %v489, %v462
    %v496 = vmul.f32 %v489, %v463
    %v497 = vmul.f32 %v489, %v464
    %v498 = vmul.f32 %v489, %v465
    %v499 = vmul.f32 %v489, %v466
    %v500 = vmul.f32 %v489, %v467
    %v501 = vmul.f32 %v489, %v468
    %v502 = vmul.f32 %v489, %v469
    %v503 = vmul.f32 %v489, %v470
    %v504 = vmul.f32 %v489, %v471
    %v505 = vmul.f32 %v489, %v472
    %v506 = vmul.f32 %v489, %v473
    %v507 = vmul.f32 %v489, %v474
    %v508 = vmul.f32 %v489, %v475
    %v509 = vmul.f32 %v489, %v476
    %v510 = vmul.f32 %v489, %v477
    %v511 = vmul.f32 %v489, %v478
    %v512 = vmul.f32 %v489, %v479
    %v513 = vmul.f32 %v489, %v480
    %v514 = vmul.f32 %v489, %v481
    %v515 = vmul.f32 %v489, %v482
    %v516 = vmul.f32 %v489, %v483
    %v517 = vmul.f32 %v489, %v484
    %v518 = vmul.f32 %v489, %v485
    %v519 = vmul.f32 %v489, %v486
    %v520 = vmul.f32 %v489, %v487
    %v521 = vmul.f32 %v489, %v488
    %v522 = vadd.f32 %v424, %v490
    %v523 = vadd.f32 %v425, %v491
    %v524 = vadd.f32 %v426, %v492
    %v525 = vadd.f32 %v427, %v493
    %v526 = vadd.f32 %v428, %v494
    %v527 = vadd.f32 %v429, %v495
    %v528 = vadd.f32 %v430, %v496
    %v529 = vadd.f32 %v431, %v497
    %v530 = vadd.f32 %v432, %v498
    %v531 = vadd.f32 %v433, %v499
    %v532 = vadd.f32 %v434, %v500
    %v533 = vadd.f32 %v435, %v501
    %v534 = vadd.f32 %v436, %v502
    %v535 = vadd.f32 %v437, %v503
    %v536 = vadd.f32 %v438, %v504
    %v537 = vadd.f32 %v439, %v505
    %v538 = vadd.f32 %v440, %v506
    %v539 = vadd.f32 %v441, %v507
    %v540 = vadd.f32 %v442, %v508
    %v541 = vadd.f32 %v443, %v509
    %v542 = vadd.f32 %v444, %v510
    %v543 = vadd.f32 %v445, %v511
    %v544 = vadd.f32 %v446, %v512
    %v545 = vadd.f32 %v447, %v513
    %v546 = vadd.f32 %v448, %v514
    %v547 = vadd.f32 %v449, %v515
    %v548 = vadd.f32 %v450, %v516
    %v549 = vadd.f32 %v451, %v517
    %v550 = vadd.f32 %v452, %v518
    %v551 = vadd.f32 %v453, %v519
    %v552 = vadd.f32 %v454, %v520
    %v553 = vadd.f32 %v455, %v521
    %554 = vst [vmem:[%s127 + $0x1] sm:$0xff] %v522
    %555 = vst [vmem:[%s127 + $0x9] sm:$0xff] %v523
    %556 = vst [vmem:[%s127 + $0x19] sm:$0xff] %v524
    %557 = vst [vmem:[%s127 + $0x21] sm:$0xff] %v525
    %558 = vst [vmem:[%s127 + $0x31] sm:$0xff] %v526
    %559 = vst [vmem:[%s127 + $0x39] sm:$0xff] %v527
    %560 = vst [vmem:[%s127 + $0x49] sm:$0xff] %v528
    %561 = vst [vmem:[%s127 + $0x51] sm:$0xff] %v529
    %562 = vst [vmem:[%s127 + $0x61] sm:$0xff] %v530
    %563 = vst [vmem:[%s127 + $0x69] sm:$0xff] %v531
    %564 = vst [vmem:[%s127 + $0x79] sm:$0xff] %v532
    %565 = vst [vmem:[%s127 + $0x81] sm:$0xff] %v533
    %566 = vst [vmem:[%s127 + $0x91] sm:$0xff] %v534
    %567 = vst [vmem:[%s127 + $0x99] sm:$0xff] %v535
    %568 = vst [vmem:[%s127 + $0xa9] sm:$0xff] %v536
    %569 = vst [vmem:[%s127 + $0xb1] sm:$0xff] %v537
    %570 = vst [vmem:[%s127 + $0xc1] sm:$0xff] %v538
    %571 = vst [vmem:[%s127 + $0xc9] sm:$0xff] %v539
    %572 = vst [vmem:[%s127 + $0xd9] sm:$0xff] %v540
    %573 = vst [vmem:[%s127 + $0xe1] sm:$0xff] %v541
    %574 = vst [vmem:[%s127 + $0xf1] sm:$0xff] %v542
    %575 = vst [vmem:[%s127 + $0xf9] sm:$0xff] %v543
    %576 = vst [vmem:[%s127 + $0x109] sm:$0xff] %v544
    %577 = vst [vmem:[%s127 + $0x111] sm:$0xff] %v545
    %578 = vst [vmem:[%s127 + $0x121] sm:$0xff] %v546
    %579 = vst [vmem:[%s127 + $0x129] sm:$0xff] %v547
    %580 = vst [vmem:[%s127 + $0x139] sm:$0xff] %v548
    %581 = vst [vmem:[%s127 + $0x141] sm:$0xff] %v549
    %582 = vst [vmem:[%s127 + $0x151] sm:$0xff] %v550
    %583 = vst [vmem:[%s127 + $0x159] sm:$0xff] %v551
    %584 = vst [vmem:[%s127 + $0x169] sm:$0xff] %v552
    %585 = vst [vmem:[%s127 + $0x171] sm:$0xff] %v553
    %s586 = sld [smem:[#allocation3 + $0x9]]
    %v587 = vld [vmem:[#allocation2] sm:$0xff]
    %v588 = vld [vmem:[#allocation2 + $0x8] sm:$0xff]
    %v589 = vld [vmem:[#allocation2 + $0x18] sm:$0xff]
    %v590 = vld [vmem:[#allocation2 + $0x20] sm:$0xff]
    %v591 = vld [vmem:[#allocation2 + $0x30] sm:$0xff]
    %v592 = vld [vmem:[#allocation2 + $0x38] sm:$0xff]
    %v593 = vld [vmem:[#allocation2 + $0x48] sm:$0xff]
    %v594 = vld [vmem:[#allocation2 + $0x50] sm:$0xff]
    %v595 = vld [vmem:[#allocation2 + $0x60] sm:$0xff]
    %v596 = vld [vmem:[#allocation2 + $0x68] sm:$0xff]
    %v597 = vld [vmem:[#allocation2 + $0x78] sm:$0xff]
    %v598 = vld [vmem:[#allocation2 + $0x80] sm:$0xff]
    %v599 = vld [vmem:[#allocation2 + $0x90] sm:$0xff]
    %v600 = vld [vmem:[#allocation2 + $0x98] sm:$0xff]
    %v601 = vld [vmem:[#allocation2 + $0xa8] sm:$0xff]
    %v602 = vld [vmem:[#allocation2 + $0xb0] sm:$0xff]
    %v603 = vld [vmem:[#allocation2 + $0xc0] sm:$0xff]
    %v604 = vld [vmem:[#allocation2 + $0xc8] sm:$0xff]
    %v605 = vld [vmem:[#allocation2 + $0xd8] sm:$0xff]
    %v606 = vld [vmem:[#allocation2 + $0xe0] sm:$0xff]
    %v607 = vld [vmem:[#allocation2 + $0xf0] sm:$0xff]
    %v608 = vld [vmem:[#allocation2 + $0xf8] sm:$0xff]
    %v609 = vld [vmem:[#allocation2 + $0x108] sm:$0xff]
    %v610 = vld [vmem:[#allocation2 + $0x110] sm:$0xff]
    %v611 = vld [vmem:[#allocation2 + $0x120] sm:$0xff]
    %v612 = vld [vmem:[#allocation2 + $0x128] sm:$0xff]
    %v613 = vld [vmem:[#allocation2 + $0x138] sm:$0xff]
    %v614 = vld [vmem:[#allocation2 + $0x140] sm:$0xff]
    %v615 = vld [vmem:[#allocation2 + $0x150] sm:$0xff]
    %v616 = vld [vmem:[#allocation2 + $0x158] sm:$0xff]
    %v617 = vld [vmem:[#allocation2 + $0x168] sm:$0xff]
    %v618 = vld [vmem:[#allocation2 + $0x170] sm:$0xff]
    %v619 = vstv %s586
    %v620 = vmul.f32 %v619, %v587
    %v621 = vmul.f32 %v619, %v588
    %v622 = vmul.f32 %v619, %v589
    %v623 = vmul.f32 %v619, %v590
    %v624 = vmul.f32 %v619, %v591
    %v625 = vmul.f32 %v619, %v592
    %v626 = vmul.f32 %v619, %v593
    %v627 = vmul.f32 %v619, %v594
    %v628 = vmul.f32 %v619, %v595
    %v629 = vmul.f32 %v619, %v596
    %v630 = vmul.f32 %v619, %v597
    %v631 = vmul.f32 %v619, %v598
    %v632 = vmul.f32 %v619, %v599
    %v633 = vmul.f32 %v619, %v600
    %v634 = vmul.f32 %v619, %v601
    %v635 = vmul.f32 %v619, %v602
    %v636 = vmul.f32 %v619, %v603
    %v637 = vmul.f32 %v619, %v604
    %v638 = vmul.f32 %v619, %v605
    %v639 = vmul.f32 %v619, %v606
    %v640 = vmul.f32 %v619, %v607
    %v641 = vmul.f32 %v619, %v608
    %v642 = vmul.f32 %v619, %v609
    %v643 = vmul.f32 %v619, %v610
    %v644 = vmul.f32 %v619, %v611
    %v645 = vmul.f32 %v619, %v612
    %v646 = vmul.f32 %v619, %v613
    %v647 = vmul.f32 %v619, %v614
    %v648 = vmul.f32 %v619, %v615
    %v649 = vmul.f32 %v619, %v616
    %v650 = vmul.f32 %v619, %v617
    %v651 = vmul.f32 %v619, %v618
    %s652 = sld [smem:[#allocation8 + $0x1]]
    %v653 = vstv %s652
    %v654 = vadd.f32 %v620, %v653
    %v655 = vadd.f32 %v621, %v653
    %v656 = vadd.f32 %v622, %v653
    %v657 = vadd.f32 %v623, %v653
    %v658 = vadd.f32 %v624, %v653
    %v659 = vadd.f32 %v625, %v653
    %v660 = vadd.f32 %v626, %v653
    %v661 = vadd.f32 %v627, %v653
    %v662 = vadd.f32 %v628, %v653
    %v663 = vadd.f32 %v629, %v653
    %v664 = vadd.f32 %v630, %v653
    %v665 = vadd.f32 %v631, %v653
    %v666 = vadd.f32 %v632, %v653
    %v667 = vadd.f32 %v633, %v653
    %v668 = vadd.f32 %v634, %v653
    %v669 = vadd.f32 %v635, %v653
    %v670 = vadd.f32 %v636, %v653
    %v671 = vadd.f32 %v637, %v653
    %v672 = vadd.f32 %v638, %v653
    %v673 = vadd.f32 %v639, %v653
    %v674 = vadd.f32 %v640, %v653
    %v675 = vadd.f32 %v641, %v653
    %v676 = vadd.f32 %v642, %v653
    %v677 = vadd.f32 %v643, %v653
    %v678 = vadd.f32 %v644, %v653
    %v679 = vadd.f32 %v645, %v653
    %v680 = vadd.f32 %v646, %v653
    %v681 = vadd.f32 %v647, %v653
    %v682 = vadd.f32 %v648, %v653
    %v683 = vadd.f32 %v649, %v653
    %v684 = vadd.f32 %v650, %v653
    %v685 = vadd.f32 %v651, %v653
    %s686 = sld [smem:[#allocation3 + $0xa]]
    %v687 = vld [vmem:[#allocation2 + $0x1] sm:$0xff]
    %v688 = vld [vmem:[#allocation2 + $0x9] sm:$0xff]
    %v689 = vld [vmem:[#allocation2 + $0x19] sm:$0xff]
    %v690 = vld [vmem:[#allocation2 + $0x21] sm:$0xff]
    %v691 = vld [vmem:[#allocation2 + $0x31] sm:$0xff]
    %v692 = vld [vmem:[#allocation2 + $0x39] sm:$0xff]
    %v693 = vld [vmem:[#allocation2 + $0x49] sm:$0xff]
    %v694 = vld [vmem:[#allocation2 + $0x51] sm:$0xff]
    %v695 = vld [vmem:[#allocation2 + $0x61] sm:$0xff]
    %v696 = vld [vmem:[#allocation2 + $0x69] sm:$0xff]
    %v697 = vld [vmem:[#allocation2 + $0x79] sm:$0xff]
    %v698 = vld [vmem:[#allocation2 + $0x81] sm:$0xff]
    %v699 = vld [vmem:[#allocation2 + $0x91] sm:$0xff]
    %v700 = vld [vmem:[#allocation2 + $0x99] sm:$0xff]
    %v701 = vld [vmem:[#allocation2 + $0xa9] sm:$0xff]
    %v702 = vld [vmem:[#allocation2 + $0xb1] sm:$0xff]
    %v703 = vld [vmem:[#allocation2 + $0xc1] sm:$0xff]
    %v704 = vld [vmem:[#allocation2 + $0xc9] sm:$0xff]
    %v705 = vld [vmem:[#allocation2 + $0xd9] sm:$0xff]
    %v706 = vld [vmem:[#allocation2 + $0xe1] sm:$0xff]
    %v707 = vld [vmem:[#allocation2 + $0xf1] sm:$0xff]
    %v708 = vld [vmem:[#allocation2 + $0xf9] sm:$0xff]
    %v709 = vld [vmem:[#allocation2 + $0x109] sm:$0xff]
    %v710 = vld [vmem:[#allocation2 + $0x111] sm:$0xff]
    %v711 = vld [vmem:[#allocation2 + $0x121] sm:$0xff]
    %v712 = vld [vmem:[#allocation2 + $0x129] sm:$0xff]
    %v713 = vld [vmem:[#allocation2 + $0x139] sm:$0xff]
    %v714 = vld [vmem:[#allocation2 + $0x141] sm:$0xff]
    %v715 = vld [vmem:[#allocation2 + $0x151] sm:$0xff]
    %v716 = vld [vmem:[#allocation2 + $0x159] sm:$0xff]
    %v717 = vld [vmem:[#allocation2 + $0x169] sm:$0xff]
    %v718 = vld [vmem:[#allocation2 + $0x171] sm:$0xff]
    %v719 = vstv %s686
    %v720 = vmul.f32 %v719, %v687
    %v721 = vmul.f32 %v719, %v688
    %v722 = vmul.f32 %v719, %v689
    %v723 = vmul.f32 %v719, %v690
    %v724 = vmul.f32 %v719, %v691
    %v725 = vmul.f32 %v719, %v692
    %v726 = vmul.f32 %v719, %v693
    %v727 = vmul.f32 %v719, %v694
    %v728 = vmul.f32 %v719, %v695
    %v729 = vmul.f32 %v719, %v696
    %v730 = vmul.f32 %v719, %v697
    %v731 = vmul.f32 %v719, %v698
    %v732 = vmul.f32 %v719, %v699
    %v733 = vmul.f32 %v719, %v700
    %v734 = vmul.f32 %v719, %v701
    %v735 = vmul.f32 %v719, %v702
    %v736 = vmul.f32 %v719, %v703
    %v737 = vmul.f32 %v719, %v704
    %v738 = vmul.f32 %v719, %v705
    %v739 = vmul.f32 %v719, %v706
    %v740 = vmul.f32 %v719, %v707
    %v741 = vmul.f32 %v719, %v708
    %v742 = vmul.f32 %v719, %v709
    %v743 = vmul.f32 %v719, %v710
    %v744 = vmul.f32 %v719, %v711
    %v745 = vmul.f32 %v719, %v712
    %v746 = vmul.f32 %v719, %v713
    %v747 = vmul.f32 %v719, %v714
    %v748 = vmul.f32 %v719, %v715
    %v749 = vmul.f32 %v719, %v716
    %v750 = vmul.f32 %v719, %v717
    %v751 = vmul.f32 %v719, %v718
    %v752 = vadd.f32 %v654, %v720
    %v753 = vadd.f32 %v655, %v721
    %v754 = vadd.f32 %v656, %v722
    %v755 = vadd.f32 %v657, %v723
    %v756 = vadd.f32 %v658, %v724
    %v757 = vadd.f32 %v659, %v725
    %v758 = vadd.f32 %v660, %v726
    %v759 = vadd.f32 %v661, %v727
    %v760 = vadd.f32 %v662, %v728
    %v761 = vadd.f32 %v663, %v729
    %v762 = vadd.f32 %v664, %v730
    %v763 = vadd.f32 %v665, %v731
    %v764 = vadd.f32 %v666, %v732
    %v765 = vadd.f32 %v667, %v733
    %v766 = vadd.f32 %v668, %v734
    %v767 = vadd.f32 %v669, %v735
    %v768 = vadd.f32 %v670, %v736
    %v769 = vadd.f32 %v671, %v737
    %v770 = vadd.f32 %v672, %v738
    %v771 = vadd.f32 %v673, %v739
    %v772 = vadd.f32 %v674, %v740
    %v773 = vadd.f32 %v675, %v741
    %v774 = vadd.f32 %v676, %v742
    %v775 = vadd.f32 %v677, %v743
    %v776 = vadd.f32 %v678, %v744
    %v777 = vadd.f32 %v679, %v745
    %v778 = vadd.f32 %v680, %v746
    %v779 = vadd.f32 %v681, %v747
    %v780 = vadd.f32 %v682, %v748
    %v781 = vadd.f32 %v683, %v749
    %v782 = vadd.f32 %v684, %v750
    %v783 = vadd.f32 %v685, %v751
    %s784 = sld [smem:[#allocation3 + $0xb]]
    %v785 = vld [vmem:[#allocation2 + $0x2] sm:$0xff]
    %v786 = vld [vmem:[#allocation2 + $0xa] sm:$0xff]
    %v787 = vld [vmem:[#allocation2 + $0x1a] sm:$0xff]
    %v788 = vld [vmem:[#allocation2 + $0x22] sm:$0xff]
    %v789 = vld [vmem:[#allocation2 + $0x32] sm:$0xff]
    %v790 = vld [vmem:[#allocation2 + $0x3a] sm:$0xff]
    %v791 = vld [vmem:[#allocation2 + $0x4a] sm:$0xff]
    %v792 = vld [vmem:[#allocation2 + $0x52] sm:$0xff]
    %v793 = vld [vmem:[#allocation2 + $0x62] sm:$0xff]
    %v794 = vld [vmem:[#allocation2 + $0x6a] sm:$0xff]
    %v795 = vld [vmem:[#allocation2 + $0x7a] sm:$0xff]
    %v796 = vld [vmem:[#allocation2 + $0x82] sm:$0xff]
    %v797 = vld [vmem:[#allocation2 + $0x92] sm:$0xff]
    %v798 = vld [vmem:[#allocation2 + $0x9a] sm:$0xff]
    %v799 = vld [vmem:[#allocation2 + $0xaa] sm:$0xff]
    %v800 = vld [vmem:[#allocation2 + $0xb2] sm:$0xff]
    %v801 = vld [vmem:[#allocation2 + $0xc2] sm:$0xff]
    %v802 = vld [vmem:[#allocation2 + $0xca] sm:$0xff]
    %v803 = vld [vmem:[#allocation2 + $0xda] sm:$0xff]
    %v804 = vld [vmem:[#allocation2 + $0xe2] sm:$0xff]
    %v805 = vld [vmem:[#allocation2 + $0xf2] sm:$0xff]
    %v806 = vld [vmem:[#allocation2 + $0xfa] sm:$0xff]
    %v807 = vld [vmem:[#allocation2 + $0x10a] sm:$0xff]
    %v808 = vld [vmem:[#allocation2 + $0x112] sm:$0xff]
    %v809 = vld [vmem:[#allocation2 + $0x122] sm:$0xff]
    %v810 = vld [vmem:[#allocation2 + $0x12a] sm:$0xff]
    %v811 = vld [vmem:[#allocation2 + $0x13a] sm:$0xff]
    %v812 = vld [vmem:[#allocation2 + $0x142] sm:$0xff]
    %v813 = vld [vmem:[#allocation2 + $0x152] sm:$0xff]
    %v814 = vld [vmem:[#allocation2 + $0x15a] sm:$0xff]
    %v815 = vld [vmem:[#allocation2 + $0x16a] sm:$0xff]
    %v816 = vld [vmem:[#allocation2 + $0x172] sm:$0xff]
    %v817 = vstv %s784
    %v818 = vmul.f32 %v817, %v785
    %v819 = vmul.f32 %v817, %v786
    %v820 = vmul.f32 %v817, %v787
    %v821 = vmul.f32 %v817, %v788
    %v822 = vmul.f32 %v817, %v789
    %v823 = vmul.f32 %v817, %v790
    %v824 = vmul.f32 %v817, %v791
    %v825 = vmul.f32 %v817, %v792
    %v826 = vmul.f32 %v817, %v793
    %v827 = vmul.f32 %v817, %v794
    %v828 = vmul.f32 %v817, %v795
    %v829 = vmul.f32 %v817, %v796
    %v830 = vmul.f32 %v817, %v797
    %v831 = vmul.f32 %v817, %v798
    %v832 = vmul.f32 %v817, %v799
    %v833 = vmul.f32 %v817, %v800
    %v834 = vmul.f32 %v817, %v801
    %v835 = vmul.f32 %v817, %v802
    %v836 = vmul.f32 %v817, %v803
    %v837 = vmul.f32 %v817, %v804
    %v838 = vmul.f32 %v817, %v805
    %v839 = vmul.f32 %v817, %v806
    %v840 = vmul.f32 %v817, %v807
    %v841 = vmul.f32 %v817, %v808
    %v842 = vmul.f32 %v817, %v809
    %v843 = vmul.f32 %v817, %v810
    %v844 = vmul.f32 %v817, %v811
    %v845 = vmul.f32 %v817, %v812
    %v846 = vmul.f32 %v817, %v813
    %v847 = vmul.f32 %v817, %v814
    %v848 = vmul.f32 %v817, %v815
    %v849 = vmul.f32 %v817, %v816
    %v850 = vadd.f32 %v752, %v818
    %v851 = vadd.f32 %v753, %v819
    %v852 = vadd.f32 %v754, %v820
    %v853 = vadd.f32 %v755, %v821
    %v854 = vadd.f32 %v756, %v822
    %v855 = vadd.f32 %v757, %v823
    %v856 = vadd.f32 %v758, %v824
    %v857 = vadd.f32 %v759, %v825
    %v858 = vadd.f32 %v760, %v826
    %v859 = vadd.f32 %v761, %v827
    %v860 = vadd.f32 %v762, %v828
    %v861 = vadd.f32 %v763, %v829
    %v862 = vadd.f32 %v764, %v830
    %v863 = vadd.f32 %v765, %v831
    %v864 = vadd.f32 %v766, %v832
    %v865 = vadd.f32 %v767, %v833
    %v866 = vadd.f32 %v768, %v834
    %v867 = vadd.f32 %v769, %v835
    %v868 = vadd.f32 %v770, %v836
    %v869 = vadd.f32 %v771, %v837
    %v870 = vadd.f32 %v772, %v838
    %v871 = vadd.f32 %v773, %v839
    %v872 = vadd.f32 %v774, %v840
    %v873 = vadd.f32 %v775, %v841
    %v874 = vadd.f32 %v776, %v842
    %v875 = vadd.f32 %v777, %v843
    %v876 = vadd.f32 %v778, %v844
    %v877 = vadd.f32 %v779, %v845
    %v878 = vadd.f32 %v780, %v846
    %v879 = vadd.f32 %v781, %v847
    %v880 = vadd.f32 %v782, %v848
    %v881 = vadd.f32 %v783, %v849
    %s882 = sld [smem:[#allocation3 + $0xc]]
    %v883 = vld [vmem:[%s127] sm:$0xff]
    %v884 = vld [vmem:[%s127 + $0x8] sm:$0xff]
    %v885 = vld [vmem:[%s127 + $0x18] sm:$0xff]
    %v886 = vld [vmem:[%s127 + $0x20] sm:$0xff]
    %v887 = vld [vmem:[%s127 + $0x30] sm:$0xff]
    %v888 = vld [vmem:[%s127 + $0x38] sm:$0xff]
    %v889 = vld [vmem:[%s127 + $0x48] sm:$0xff]
    %v890 = vld [vmem:[%s127 + $0x50] sm:$0xff]
    %v891 = vld [vmem:[%s127 + $0x60] sm:$0xff]
    %v892 = vld [vmem:[%s127 + $0x68] sm:$0xff]
    %v893 = vld [vmem:[%s127 + $0x78] sm:$0xff]
    %v894 = vld [vmem:[%s127 + $0x80] sm:$0xff]
    %v895 = vld [vmem:[%s127 + $0x90] sm:$0xff]
    %v896 = vld [vmem:[%s127 + $0x98] sm:$0xff]
    %v897 = vld [vmem:[%s127 + $0xa8] sm:$0xff]
    %v898 = vld [vmem:[%s127 + $0xb0] sm:$0xff]
    %v899 = vld [vmem:[%s127 + $0xc0] sm:$0xff]
    %v900 = vld [vmem:[%s127 + $0xc8] sm:$0xff]
    %v901 = vld [vmem:[%s127 + $0xd8] sm:$0xff]
    %v902 = vld [vmem:[%s127 + $0xe0] sm:$0xff]
    %v903 = vld [vmem:[%s127 + $0xf0] sm:$0xff]
    %v904 = vld [vmem:[%s127 + $0xf8] sm:$0xff]
    %v905 = vld [vmem:[%s127 + $0x108] sm:$0xff]
    %v906 = vld [vmem:[%s127 + $0x110] sm:$0xff]
    %v907 = vld [vmem:[%s127 + $0x120] sm:$0xff]
    %v908 = vld [vmem:[%s127 + $0x128] sm:$0xff]
    %v909 = vld [vmem:[%s127 + $0x138] sm:$0xff]
    %v910 = vld [vmem:[%s127 + $0x140] sm:$0xff]
    %v911 = vld [vmem:[%s127 + $0x150] sm:$0xff]
    %v912 = vld [vmem:[%s127 + $0x158] sm:$0xff]
    %v913 = vld [vmem:[%s127 + $0x168] sm:$0xff]
    %v914 = vld [vmem:[%s127 + $0x170] sm:$0xff]
    %v915 = vstv %s882
    %v916 = vmul.f32 %v915, %v883
    %v917 = vmul.f32 %v915, %v884
    %v918 = vmul.f32 %v915, %v885
    %v919 = vmul.f32 %v915, %v886
    %v920 = vmul.f32 %v915, %v887
    %v921 = vmul.f32 %v915, %v888
    %v922 = vmul.f32 %v915, %v889
    %v923 = vmul.f32 %v915, %v890
    %v924 = vmul.f32 %v915, %v891
    %v925 = vmul.f32 %v915, %v892
    %v926 = vmul.f32 %v915, %v893
    %v927 = vmul.f32 %v915, %v894
    %v928 = vmul.f32 %v915, %v895
    %v929 = vmul.f32 %v915, %v896
    %v930 = vmul.f32 %v915, %v897
    %v931 = vmul.f32 %v915, %v898
    %v932 = vmul.f32 %v915, %v899
    %v933 = vmul.f32 %v915, %v900
    %v934 = vmul.f32 %v915, %v901
    %v935 = vmul.f32 %v915, %v902
    %v936 = vmul.f32 %v915, %v903
    %v937 = vmul.f32 %v915, %v904
    %v938 = vmul.f32 %v915, %v905
    %v939 = vmul.f32 %v915, %v906
    %v940 = vmul.f32 %v915, %v907
    %v941 = vmul.f32 %v915, %v908
    %v942 = vmul.f32 %v915, %v909
    %v943 = vmul.f32 %v915, %v910
    %v944 = vmul.f32 %v915, %v911
    %v945 = vmul.f32 %v915, %v912
    %v946 = vmul.f32 %v915, %v913
    %v947 = vmul.f32 %v915, %v914
    %v948 = vadd.f32 %v850, %v916
    %v949 = vadd.f32 %v851, %v917
    %v950 = vadd.f32 %v852, %v918
    %v951 = vadd.f32 %v853, %v919
    %v952 = vadd.f32 %v854, %v920
    %v953 = vadd.f32 %v855, %v921
    %v954 = vadd.f32 %v856, %v922
    %v955 = vadd.f32 %v857, %v923
    %v956 = vadd.f32 %v858, %v924
    %v957 = vadd.f32 %v859, %v925
    %v958 = vadd.f32 %v860, %v926
    %v959 = vadd.f32 %v861, %v927
    %v960 = vadd.f32 %v862, %v928
    %v961 = vadd.f32 %v863, %v929
    %v962 = vadd.f32 %v864, %v930
    %v963 = vadd.f32 %v865, %v931
    %v964 = vadd.f32 %v866, %v932
    %v965 = vadd.f32 %v867, %v933
    %v966 = vadd.f32 %v868, %v934
    %v967 = vadd.f32 %v869, %v935
    %v968 = vadd.f32 %v870, %v936
    %v969 = vadd.f32 %v871, %v937
    %v970 = vadd.f32 %v872, %v938
    %v971 = vadd.f32 %v873, %v939
    %v972 = vadd.f32 %v874, %v940
    %v973 = vadd.f32 %v875, %v941
    %v974 = vadd.f32 %v876, %v942
    %v975 = vadd.f32 %v877, %v943
    %v976 = vadd.f32 %v878, %v944
    %v977 = vadd.f32 %v879, %v945
    %v978 = vadd.f32 %v880, %v946
    %v979 = vadd.f32 %v881, %v947
    %s980 = sld [smem:[#allocation3 + $0xd]]
    %v981 = vld [vmem:[%s127 + $0x1] sm:$0xff]
    %v982 = vld [vmem:[%s127 + $0x9] sm:$0xff]
    %v983 = vld [vmem:[%s127 + $0x19] sm:$0xff]
    %v984 = vld [vmem:[%s127 + $0x21] sm:$0xff]
    %v985 = vld [vmem:[%s127 + $0x31] sm:$0xff]
    %v986 = vld [vmem:[%s127 + $0x39] sm:$0xff]
    %v987 = vld [vmem:[%s127 + $0x49] sm:$0xff]
    %v988 = vld [vmem:[%s127 + $0x51] sm:$0xff]
    %v989 = vld [vmem:[%s127 + $0x61] sm:$0xff]
    %v990 = vld [vmem:[%s127 + $0x69] sm:$0xff]
    %v991 = vld [vmem:[%s127 + $0x79] sm:$0xff]
    %v992 = vld [vmem:[%s127 + $0x81] sm:$0xff]
    %v993 = vld [vmem:[%s127 + $0x91] sm:$0xff]
    %v994 = vld [vmem:[%s127 + $0x99] sm:$0xff]
    %v995 = vld [vmem:[%s127 + $0xa9] sm:$0xff]
    %v996 = vld [vmem:[%s127 + $0xb1] sm:$0xff]
    %v997 = vld [vmem:[%s127 + $0xc1] sm:$0xff]
    %v998 = vld [vmem:[%s127 + $0xc9] sm:$0xff]
    %v999 = vld [vmem:[%s127 + $0xd9] sm:$0xff]
    %v1000 = vld [vmem:[%s127 + $0xe1] sm:$0xff]
    %v1001 = vld [vmem:[%s127 + $0xf1] sm:$0xff]
    %v1002 = vld [vmem:[%s127 + $0xf9] sm:$0xff]
    %v1003 = vld [vmem:[%s127 + $0x109] sm:$0xff]
    %v1004 = vld [vmem:[%s127 + $0x111] sm:$0xff]
    %v1005 = vld [vmem:[%s127 + $0x121] sm:$0xff]
    %v1006 = vld [vmem:[%s127 + $0x129] sm:$0xff]
    %v1007 = vld [vmem:[%s127 + $0x139] sm:$0xff]
    %v1008 = vld [vmem:[%s127 + $0x141] sm:$0xff]
    %v1009 = vld [vmem:[%s127 + $0x151] sm:$0xff]
    %v1010 = vld [vmem:[%s127 + $0x159] sm:$0xff]
    %v1011 = vld [vmem:[%s127 + $0x169] sm:$0xff]
    %v1012 = vld [vmem:[%s127 + $0x171] sm:$0xff]
    %v1013 = vstv %s980
    %v1014 = vmul.f32 %v1013, %v981
    %v1015 = vmul.f32 %v1013, %v982
    %v1016 = vmul.f32 %v1013, %v983
    %v1017 = vmul.f32 %v1013, %v984
    %v1018 = vmul.f32 %v1013, %v985
    %v1019 = vmul.f32 %v1013, %v986
    %v1020 = vmul.f32 %v1013, %v987
    %v1021 = vmul.f32 %v1013, %v988
    %v1022 = vmul.f32 %v1013, %v989
    %v1023 = vmul.f32 %v1013, %v990
    %v1024 = vmul.f32 %v1013, %v991
    %v1025 = vmul.f32 %v1013, %v992
    %v1026 = vmul.f32 %v1013, %v993
    %v1027 = vmul.f32 %v1013, %v994
    %v1028 = vmul.f32 %v1013, %v995
    %v1029 = vmul.f32 %v1013, %v996
    %v1030 = vmul.f32 %v1013, %v997
    %v1031 = vmul.f32 %v1013, %v998
    %v1032 = vmul.f32 %v1013, %v999
    %v1033 = vmul.f32 %v1013, %v1000
    %v1034 = vmul.f32 %v1013, %v1001
    %v1035 = vmul.f32 %v1013, %v1002
    %v1036 = vmul.f32 %v1013, %v1003
    %v1037 = vmul.f32 %v1013, %v1004
    %v1038 = vmul.f32 %v1013, %v1005
    %v1039 = vmul.f32 %v1013, %v1006
    %v1040 = vmul.f32 %v1013, %v1007
    %v1041 = vmul.f32 %v1013, %v1008
    %v1042 = vmul.f32 %v1013, %v1009
    %v1043 = vmul.f32 %v1013, %v1010
    %v1044 = vmul.f32 %v1013, %v1011
    %v1045 = vmul.f32 %v1013, %v1012
    %v1046 = vadd.f32 %v948, %v1014
    %v1047 = vadd.f32 %v949, %v1015
    %v1048 = vadd.f32 %v950, %v1016
    %v1049 = vadd.f32 %v951, %v1017
    %v1050 = vadd.f32 %v952, %v1018
    %v1051 = vadd.f32 %v953, %v1019
    %v1052 = vadd.f32 %v954, %v1020
    %v1053 = vadd.f32 %v955, %v1021
    %v1054 = vadd.f32 %v956, %v1022
    %v1055 = vadd.f32 %v957, %v1023
    %v1056 = vadd.f32 %v958, %v1024
    %v1057 = vadd.f32 %v959, %v1025
    %v1058 = vadd.f32 %v960, %v1026
    %v1059 = vadd.f32 %v961, %v1027
    %v1060 = vadd.f32 %v962, %v1028
    %v1061 = vadd.f32 %v963, %v1029
    %v1062 = vadd.f32 %v964, %v1030
    %v1063 = vadd.f32 %v965, %v1031
    %v1064 = vadd.f32 %v966, %v1032
    %v1065 = vadd.f32 %v967, %v1033
    %v1066 = vadd.f32 %v968, %v1034
    %v1067 = vadd.f32 %v969, %v1035
    %v1068 = vadd.f32 %v970, %v1036
    %v1069 = vadd.f32 %v971, %v1037
    %v1070 = vadd.f32 %v972, %v1038
    %v1071 = vadd.f32 %v973, %v1039
    %v1072 = vadd.f32 %v974, %v1040
    %v1073 = vadd.f32 %v975, %v1041
    %v1074 = vadd.f32 %v976, %v1042
    %v1075 = vadd.f32 %v977, %v1043
    %v1076 = vadd.f32 %v978, %v1044
    %v1077 = vadd.f32 %v979, %v1045
    %1078 = vst [vmem:[%s127 + $0x1] sm:$0xff] %v1046
    %1079 = vst [vmem:[%s127 + $0x9] sm:$0xff] %v1047
    %1080 = vst [vmem:[%s127 + $0x19] sm:$0xff] %v1048
    %1081 = vst [vmem:[%s127 + $0x21] sm:$0xff] %v1049
    %1082 = vst [vmem:[%s127 + $0x31] sm:$0xff] %v1050
    %1083 = vst [vmem:[%s127 + $0x39] sm:$0xff] %v1051
    %1084 = vst [vmem:[%s127 + $0x49] sm:$0xff] %v1052
    %1085 = vst [vmem:[%s127 + $0x51] sm:$0xff] %v1053
    %1086 = vst [vmem:[%s127 + $0x61] sm:$0xff] %v1054
    %1087 = vst [vmem:[%s127 + $0x69] sm:$0xff] %v1055
    %1088 = vst [vmem:[%s127 + $0x79] sm:$0xff] %v1056
    %1089 = vst [vmem:[%s127 + $0x81] sm:$0xff] %v1057
    %1090 = vst [vmem:[%s127 + $0x91] sm:$0xff] %v1058
    %1091 = vst [vmem:[%s127 + $0x99] sm:$0xff] %v1059
    %1092 = vst [vmem:[%s127 + $0xa9] sm:$0xff] %v1060
    %1093 = vst [vmem:[%s127 + $0xb1] sm:$0xff] %v1061
    %1094 = vst [vmem:[%s127 + $0xc1] sm:$0xff] %v1062
    %1095 = vst [vmem:[%s127 + $0xc9] sm:$0xff] %v1063
    %1096 = vst [vmem:[%s127 + $0xd9] sm:$0xff] %v1064
    %1097 = vst [vmem:[%s127 + $0xe1] sm:$0xff] %v1065
    %1098 = vst [vmem:[%s127 + $0xf1] sm:$0xff] %v1066
    %1099 = vst [vmem:[%s127 + $0xf9] sm:$0xff] %v1067
    %1100 = vst [vmem:[%s127 + $0x109] sm:$0xff] %v1068
    %1101 = vst [vmem:[%s127 + $0x111] sm:$0xff] %v1069
    %1102 = vst [vmem:[%s127 + $0x121] sm:$0xff] %v1070
    %1103 = vst [vmem:[%s127 + $0x129] sm:$0xff] %v1071
    %1104 = vst [vmem:[%s127 + $0x139] sm:$0xff] %v1072
    %1105 = vst [vmem:[%s127 + $0x141] sm:$0xff] %v1073
    %1106 = vst [vmem:[%s127 + $0x151] sm:$0xff] %v1074
    %1107 = vst [vmem:[%s127 + $0x159] sm:$0xff] %v1075
    %1108 = vst [vmem:[%s127 + $0x169] sm:$0xff] %v1076
    %1109 = vst [vmem:[%s127 + $0x171] sm:$0xff] %v1077
    %s1110 = sld [smem:[#allocation3 + $0x12]]
    %v1111 = vld [vmem:[#allocation2] sm:$0xff]
    %v1112 = vld [vmem:[#allocation2 + $0x8] sm:$0xff]
    %v1113 = vld [vmem:[#allocation2 + $0x18] sm:$0xff]
    %v1114 = vld [vmem:[#allocation2 + $0x20] sm:$0xff]
    %v1115 = vld [vmem:[#allocation2 + $0x30] sm:$0xff]
    %v1116 = vld [vmem:[#allocation2 + $0x38] sm:$0xff]
    %v1117 = vld [vmem:[#allocation2 + $0x48] sm:$0xff]
    %v1118 = vld [vmem:[#allocation2 + $0x50] sm:$0xff]
    %v1119 = vld [vmem:[#allocation2 + $0x60] sm:$0xff]
    %v1120 = vld [vmem:[#allocation2 + $0x68] sm:$0xff]
    %v1121 = vld [vmem:[#allocation2 + $0x78] sm:$0xff]
    %v1122 = vld [vmem:[#allocation2 + $0x80] sm:$0xff]
    %v1123 = vld [vmem:[#allocation2 + $0x90] sm:$0xff]
    %v1124 = vld [vmem:[#allocation2 + $0x98] sm:$0xff]
    %v1125 = vld [vmem:[#allocation2 + $0xa8] sm:$0xff]
    %v1126 = vld [vmem:[#allocation2 + $0xb0] sm:$0xff]
    %v1127 = vld [vmem:[#allocation2 + $0xc0] sm:$0xff]
    %v1128 = vld [vmem:[#allocation2 + $0xc8] sm:$0xff]
    %v1129 = vld [vmem:[#allocation2 + $0xd8] sm:$0xff]
    %v1130 = vld [vmem:[#allocation2 + $0xe0] sm:$0xff]
    %v1131 = vld [vmem:[#allocation2 + $0xf0] sm:$0xff]
    %v1132 = vld [vmem:[#allocation2 + $0xf8] sm:$0xff]
    %v1133 = vld [vmem:[#allocation2 + $0x108] sm:$0xff]
    %v1134 = vld [vmem:[#allocation2 + $0x110] sm:$0xff]
    %v1135 = vld [vmem:[#allocation2 + $0x120] sm:$0xff]
    %v1136 = vld [vmem:[#allocation2 + $0x128] sm:$0xff]
    %v1137 = vld [vmem:[#allocation2 + $0x138] sm:$0xff]
    %v1138 = vld [vmem:[#allocation2 + $0x140] sm:$0xff]
    %v1139 = vld [vmem:[#allocation2 + $0x150] sm:$0xff]
    %v1140 = vld [vmem:[#allocation2 + $0x158] sm:$0xff]
    %v1141 = vld [vmem:[#allocation2 + $0x168] sm:$0xff]
    %v1142 = vld [vmem:[#allocation2 + $0x170] sm:$0xff]
    %v1143 = vstv %s1110
    %v1144 = vmul.f32 %v1143, %v1111
    %v1145 = vmul.f32 %v1143, %v1112
    %v1146 = vmul.f32 %v1143, %v1113
    %v1147 = vmul.f32 %v1143, %v1114
    %v1148 = vmul.f32 %v1143, %v1115
    %v1149 = vmul.f32 %v1143, %v1116
    %v1150 = vmul.f32 %v1143, %v1117
    %v1151 = vmul.f32 %v1143, %v1118
    %v1152 = vmul.f32 %v1143, %v1119
    %v1153 = vmul.f32 %v1143, %v1120
    %v1154 = vmul.f32 %v1143, %v1121
    %v1155 = vmul.f32 %v1143, %v1122
    %v1156 = vmul.f32 %v1143, %v1123
    %v1157 = vmul.f32 %v1143, %v1124
    %v1158 = vmul.f32 %v1143, %v1125
    %v1159 = vmul.f32 %v1143, %v1126
    %v1160 = vmul.f32 %v1143, %v1127
    %v1161 = vmul.f32 %v1143, %v1128
    %v1162 = vmul.f32 %v1143, %v1129
    %v1163 = vmul.f32 %v1143, %v1130
    %v1164 = vmul.f32 %v1143, %v1131
    %v1165 = vmul.f32 %v1143, %v1132
    %v1166 = vmul.f32 %v1143, %v1133
    %v1167 = vmul.f32 %v1143, %v1134
    %v1168 = vmul.f32 %v1143, %v1135
    %v1169 = vmul.f32 %v1143, %v1136
    %v1170 = vmul.f32 %v1143, %v1137
    %v1171 = vmul.f32 %v1143, %v1138
    %v1172 = vmul.f32 %v1143, %v1139
    %v1173 = vmul.f32 %v1143, %v1140
    %v1174 = vmul.f32 %v1143, %v1141
    %v1175 = vmul.f32 %v1143, %v1142
    %s1176 = sld [smem:[#allocation8 + $0x2]]
    %v1177 = vstv %s1176
    %v1178 = vadd.f32 %v1144, %v1177
    %v1179 = vadd.f32 %v1145, %v1177
    %v1180 = vadd.f32 %v1146, %v1177
    %v1181 = vadd.f32 %v1147, %v1177
    %v1182 = vadd.f32 %v1148, %v1177
    %v1183 = vadd.f32 %v1149, %v1177
    %v1184 = vadd.f32 %v1150, %v1177
    %v1185 = vadd.f32 %v1151, %v1177
    %v1186 = vadd.f32 %v1152, %v1177
    %v1187 = vadd.f32 %v1153, %v1177
    %v1188 = vadd.f32 %v1154, %v1177
    %v1189 = vadd.f32 %v1155, %v1177
    %v1190 = vadd.f32 %v1156, %v1177
    %v1191 = vadd.f32 %v1157, %v1177
    %v1192 = vadd.f32 %v1158, %v1177
    %v1193 = vadd.f32 %v1159, %v1177
    %v1194 = vadd.f32 %v1160, %v1177
    %v1195 = vadd.f32 %v1161, %v1177
    %v1196 = vadd.f32 %v1162, %v1177
    %v1197 = vadd.f32 %v1163, %v1177
    %v1198 = vadd.f32 %v1164, %v1177
    %v1199 = vadd.f32 %v1165, %v1177
    %v1200 = vadd.f32 %v1166, %v1177
    %v1201 = vadd.f32 %v1167, %v1177
    %v1202 = vadd.f32 %v1168, %v1177
    %v1203 = vadd.f32 %v1169, %v1177
    %v1204 = vadd.f32 %v1170, %v1177
    %v1205 = vadd.f32 %v1171, %v1177
    %v1206 = vadd.f32 %v1172, %v1177
    %v1207 = vadd.f32 %v1173, %v1177
    %v1208 = vadd.f32 %v1174, %v1177
    %v1209 = vadd.f32 %v1175, %v1177
    %s1210 = sld [smem:[#allocation3 + $0x13]]
    %v1211 = vld [vmem:[#allocation2 + $0x1] sm:$0xff]
    %v1212 = vld [vmem:[#allocation2 + $0x9] sm:$0xff]
    %v1213 = vld [vmem:[#allocation2 + $0x19] sm:$0xff]
    %v1214 = vld [vmem:[#allocation2 + $0x21] sm:$0xff]
    %v1215 = vld [vmem:[#allocation2 + $0x31] sm:$0xff]
    %v1216 = vld [vmem:[#allocation2 + $0x39] sm:$0xff]
    %v1217 = vld [vmem:[#allocation2 + $0x49] sm:$0xff]
    %v1218 = vld [vmem:[#allocation2 + $0x51] sm:$0xff]
    %v1219 = vld [vmem:[#allocation2 + $0x61] sm:$0xff]
    %v1220 = vld [vmem:[#allocation2 + $0x69] sm:$0xff]
    %v1221 = vld [vmem:[#allocation2 + $0x79] sm:$0xff]
    %v1222 = vld [vmem:[#allocation2 + $0x81] sm:$0xff]
    %v1223 = vld [vmem:[#allocation2 + $0x91] sm:$0xff]
    %v1224 = vld [vmem:[#allocation2 + $0x99] sm:$0xff]
    %v1225 = vld [vmem:[#allocation2 + $0xa9] sm:$0xff]
    %v1226 = vld [vmem:[#allocation2 + $0xb1] sm:$0xff]
    %v1227 = vld [vmem:[#allocation2 + $0xc1] sm:$0xff]
    %v1228 = vld [vmem:[#allocation2 + $0xc9] sm:$0xff]
    %v1229 = vld [vmem:[#allocation2 + $0xd9] sm:$0xff]
    %v1230 = vld [vmem:[#allocation2 + $0xe1] sm:$0xff]
    %v1231 = vld [vmem:[#allocation2 + $0xf1] sm:$0xff]
    %v1232 = vld [vmem:[#allocation2 + $0xf9] sm:$0xff]
    %v1233 = vld [vmem:[#allocation2 + $0x109] sm:$0xff]
    %v1234 = vld [vmem:[#allocation2 + $0x111] sm:$0xff]
    %v1235 = vld [vmem:[#allocation2 + $0x121] sm:$0xff]
    %v1236 = vld [vmem:[#allocation2 + $0x129] sm:$0xff]
    %v1237 = vld [vmem:[#allocation2 + $0x139] sm:$0xff]
    %v1238 = vld [vmem:[#allocation2 + $0x141] sm:$0xff]
    %v1239 = vld [vmem:[#allocation2 + $0x151] sm:$0xff]
    %v1240 = vld [vmem:[#allocation2 + $0x159] sm:$0xff]
    %v1241 = vld [vmem:[#allocation2 + $0x169] sm:$0xff]
    %v1242 = vld [vmem:[#allocation2 + $0x171] sm:$0xff]
    %v1243 = vstv %s1210
    %v1244 = vmul.f32 %v1243, %v1211
    %v1245 = vmul.f32 %v1243, %v1212
    %v1246 = vmul.f32 %v1243, %v1213
    %v1247 = vmul.f32 %v1243, %v1214
    %v1248 = vmul.f32 %v1243, %v1215
    %v1249 = vmul.f32 %v1243, %v1216
    %v1250 = vmul.f32 %v1243, %v1217
    %v1251 = vmul.f32 %v1243, %v1218
    %v1252 = vmul.f32 %v1243, %v1219
    %v1253 = vmul.f32 %v1243, %v1220
    %v1254 = vmul.f32 %v1243, %v1221
    %v1255 = vmul.f32 %v1243, %v1222
    %v1256 = vmul.f32 %v1243, %v1223
    %v1257 = vmul.f32 %v1243, %v1224
    %v1258 = vmul.f32 %v1243, %v1225
    %v1259 = vmul.f32 %v1243, %v1226
    %v1260 = vmul.f32 %v1243, %v1227
    %v1261 = vmul.f32 %v1243, %v1228
    %v1262 = vmul.f32 %v1243, %v1229
    %v1263 = vmul.f32 %v1243, %v1230
    %v1264 = vmul.f32 %v1243, %v1231
    %v1265 = vmul.f32 %v1243, %v1232
    %v1266 = vmul.f32 %v1243, %v1233
    %v1267 = vmul.f32 %v1243, %v1234
    %v1268 = vmul.f32 %v1243, %v1235
    %v1269 = vmul.f32 %v1243, %v1236
    %v1270 = vmul.f32 %v1243, %v1237
    %v1271 = vmul.f32 %v1243, %v1238
    %v1272 = vmul.f32 %v1243, %v1239
    %v1273 = vmul.f32 %v1243, %v1240
    %v1274 = vmul.f32 %v1243, %v1241
    %v1275 = vmul.f32 %v1243, %v1242
    %v1276 = vadd.f32 %v1178, %v1244
    %v1277 = vadd.f32 %v1179, %v1245
    %v1278 = vadd.f32 %v1180, %v1246
    %v1279 = vadd.f32 %v1181, %v1247
    %v1280 = vadd.f32 %v1182, %v1248
    %v1281 = vadd.f32 %v1183, %v1249
    %v1282 = vadd.f32 %v1184, %v1250
    %v1283 = vadd.f32 %v1185, %v1251
    %v1284 = vadd.f32 %v1186, %v1252
    %v1285 = vadd.f32 %v1187, %v1253
    %v1286 = vadd.f32 %v1188, %v1254
    %v1287 = vadd.f32 %v1189, %v1255
    %v1288 = vadd.f32 %v1190, %v1256
    %v1289 = vadd.f32 %v1191, %v1257
    %v1290 = vadd.f32 %v1192, %v1258
    %v1291 = vadd.f32 %v1193, %v1259
    %v1292 = vadd.f32 %v1194, %v1260
    %v1293 = vadd.f32 %v1195, %v1261
    %v1294 = vadd.f32 %v1196, %v1262
    %v1295 = vadd.f32 %v1197, %v1263
    %v1296 = vadd.f32 %v1198, %v1264
    %v1297 = vadd.f32 %v1199, %v1265
    %v1298 = vadd.f32 %v1200, %v1266
    %v1299 = vadd.f32 %v1201, %v1267
    %v1300 = vadd.f32 %v1202, %v1268
    %v1301 = vadd.f32 %v1203, %v1269
    %v1302 = vadd.f32 %v1204, %v1270
    %v1303 = vadd.f32 %v1205, %v1271
    %v1304 = vadd.f32 %v1206, %v1272
    %v1305 = vadd.f32 %v1207, %v1273
    %v1306 = vadd.f32 %v1208, %v1274
    %v1307 = vadd.f32 %v1209, %v1275
    %s1308 = sld [smem:[#allocation3 + $0x14]]
    %v1309 = vld [vmem:[#allocation2 + $0x2] sm:$0xff]
    %v1310 = vld [vmem:[#allocation2 + $0xa] sm:$0xff]
    %v1311 = vld [vmem:[#allocation2 + $0x1a] sm:$0xff]
    %v1312 = vld [vmem:[#allocation2 + $0x22] sm:$0xff]
    %v1313 = vld [vmem:[#allocation2 + $0x32] sm:$0xff]
    %v1314 = vld [vmem:[#allocation2 + $0x3a] sm:$0xff]
    %v1315 = vld [vmem:[#allocation2 + $0x4a] sm:$0xff]
    %v1316 = vld [vmem:[#allocation2 + $0x52] sm:$0xff]
    %v1317 = vld [vmem:[#allocation2 + $0x62] sm:$0xff]
    %v1318 = vld [vmem:[#allocation2 + $0x6a] sm:$0xff]
    %v1319 = vld [vmem:[#allocation2 + $0x7a] sm:$0xff]
    %v1320 = vld [vmem:[#allocation2 + $0x82] sm:$0xff]
    %v1321 = vld [vmem:[#allocation2 + $0x92] sm:$0xff]
    %v1322 = vld [vmem:[#allocation2 + $0x9a] sm:$0xff]
    %v1323 = vld [vmem:[#allocation2 + $0xaa] sm:$0xff]
    %v1324 = vld [vmem:[#allocation2 + $0xb2] sm:$0xff]
    %v1325 = vld [vmem:[#allocation2 + $0xc2] sm:$0xff]
    %v1326 = vld [vmem:[#allocation2 + $0xca] sm:$0xff]
    %v1327 = vld [vmem:[#allocation2 + $0xda] sm:$0xff]
    %v1328 = vld [vmem:[#allocation2 + $0xe2] sm:$0xff]
    %v1329 = vld [vmem:[#allocation2 + $0xf2] sm:$0xff]
    %v1330 = vld [vmem:[#allocation2 + $0xfa] sm:$0xff]
    %v1331 = vld [vmem:[#allocation2 + $0x10a] sm:$0xff]
    %v1332 = vld [vmem:[#allocation2 + $0x112] sm:$0xff]
    %v1333 = vld [vmem:[#allocation2 + $0x122] sm:$0xff]
    %v1334 = vld [vmem:[#allocation2 + $0x12a] sm:$0xff]
    %v1335 = vld [vmem:[#allocation2 + $0x13a] sm:$0xff]
    %v1336 = vld [vmem:[#allocation2 + $0x142] sm:$0xff]
    %v1337 = vld [vmem:[#allocation2 + $0x152] sm:$0xff]
    %v1338 = vld [vmem:[#allocation2 + $0x15a] sm:$0xff]
    %v1339 = vld [vmem:[#allocation2 + $0x16a] sm:$0xff]
    %v1340 = vld [vmem:[#allocation2 + $0x172] sm:$0xff]
    %v1341 = vstv %s1308
    %v1342 = vmul.f32 %v1341, %v1309
    %v1343 = vmul.f32 %v1341, %v1310
    %v1344 = vmul.f32 %v1341, %v1311
    %v1345 = vmul.f32 %v1341, %v1312
    %v1346 = vmul.f32 %v1341, %v1313
    %v1347 = vmul.f32 %v1341, %v1314
    %v1348 = vmul.f32 %v1341, %v1315
    %v1349 = vmul.f32 %v1341, %v1316
    %v1350 = vmul.f32 %v1341, %v1317
    %v1351 = vmul.f32 %v1341, %v1318
    %v1352 = vmul.f32 %v1341, %v1319
    %v1353 = vmul.f32 %v1341, %v1320
    %v1354 = vmul.f32 %v1341, %v1321
    %v1355 = vmul.f32 %v1341, %v1322
    %v1356 = vmul.f32 %v1341, %v1323
    %v1357 = vmul.f32 %v1341, %v1324
    %v1358 = vmul.f32 %v1341, %v1325
    %v1359 = vmul.f32 %v1341, %v1326
    %v1360 = vmul.f32 %v1341, %v1327
    %v1361 = vmul.f32 %v1341, %v1328
    %v1362 = vmul.f32 %v1341, %v1329
    %v1363 = vmul.f32 %v1341, %v1330
    %v1364 = vmul.f32 %v1341, %v1331
    %v1365 = vmul.f32 %v1341, %v1332
    %v1366 = vmul.f32 %v1341, %v1333
    %v1367 = vmul.f32 %v1341, %v1334
    %v1368 = vmul.f32 %v1341, %v1335
    %v1369 = vmul.f32 %v1341, %v1336
    %v1370 = vmul.f32 %v1341, %v1337
    %v1371 = vmul.f32 %v1341, %v1338
    %v1372 = vmul.f32 %v1341, %v1339
    %v1373 = vmul.f32 %v1341, %v1340
    %v1374 = vadd.f32 %v1276, %v1342
    %v1375 = vadd.f32 %v1277, %v1343
    %v1376 = vadd.f32 %v1278, %v1344
    %v1377 = vadd.f32 %v1279, %v1345
    %v1378 = vadd.f32 %v1280, %v1346
    %v1379 = vadd.f32 %v1281, %v1347
    %v1380 = vadd.f32 %v1282, %v1348
    %v1381 = vadd.f32 %v1283, %v1349
    %v1382 = vadd.f32 %v1284, %v1350
    %v1383 = vadd.f32 %v1285, %v1351
    %v1384 = vadd.f32 %v1286, %v1352
    %v1385 = vadd.f32 %v1287, %v1353
    %v1386 = vadd.f32 %v1288, %v1354
    %v1387 = vadd.f32 %v1289, %v1355
    %v1388 = vadd.f32 %v1290, %v1356
    %v1389 = vadd.f32 %v1291, %v1357
    %v1390 = vadd.f32 %v1292, %v1358
    %v1391 = vadd.f32 %v1293, %v1359
    %v1392 = vadd.f32 %v1294, %v1360
    %v1393 = vadd.f32 %v1295, %v1361
    %v1394 = vadd.f32 %v1296, %v1362
    %v1395 = vadd.f32 %v1297, %v1363
    %v1396 = vadd.f32 %v1298, %v1364
    %v1397 = vadd.f32 %v1299, %v1365
    %v1398 = vadd.f32 %v1300, %v1366
    %v1399 = vadd.f32 %v1301, %v1367
    %v1400 = vadd.f32 %v1302, %v1368
    %v1401 = vadd.f32 %v1303, %v1369
    %v1402 = vadd.f32 %v1304, %v1370
    %v1403 = vadd.f32 %v1305, %v1371
    %v1404 = vadd.f32 %v1306, %v1372
    %v1405 = vadd.f32 %v1307, %v1373
    %s1406 = sld [smem:[#allocation3 + $0x15]]
    %v1407 = vld [vmem:[%s127] sm:$0xff]
    %v1408 = vld [vmem:[%s127 + $0x8] sm:$0xff]
    %v1409 = vld [vmem:[%s127 + $0x18] sm:$0xff]
    %v1410 = vld [vmem:[%s127 + $0x20] sm:$0xff]
    %v1411 = vld [vmem:[%s127 + $0x30] sm:$0xff]
    %v1412 = vld [vmem:[%s127 + $0x38] sm:$0xff]
    %v1413 = vld [vmem:[%s127 + $0x48] sm:$0xff]
    %v1414 = vld [vmem:[%s127 + $0x50] sm:$0xff]
    %v1415 = vld [vmem:[%s127 + $0x60] sm:$0xff]
    %v1416 = vld [vmem:[%s127 + $0x68] sm:$0xff]
    %v1417 = vld [vmem:[%s127 + $0x78] sm:$0xff]
    %v1418 = vld [vmem:[%s127 + $0x80] sm:$0xff]
    %v1419 = vld [vmem:[%s127 + $0x90] sm:$0xff]
    %v1420 = vld [vmem:[%s127 + $0x98] sm:$0xff]
    %v1421 = vld [vmem:[%s127 + $0xa8] sm:$0xff]
    %v1422 = vld [vmem:[%s127 + $0xb0] sm:$0xff]
    %v1423 = vld [vmem:[%s127 + $0xc0] sm:$0xff]
    %v1424 = vld [vmem:[%s127 + $0xc8] sm:$0xff]
    %v1425 = vld [vmem:[%s127 + $0xd8] sm:$0xff]
    %v1426 = vld [vmem:[%s127 + $0xe0] sm:$0xff]
    %v1427 = vld [vmem:[%s127 + $0xf0] sm:$0xff]
    %v1428 = vld [vmem:[%s127 + $0xf8] sm:$0xff]
    %v1429 = vld [vmem:[%s127 + $0x108] sm:$0xff]
    %v1430 = vld [vmem:[%s127 + $0x110] sm:$0xff]
    %v1431 = vld [vmem:[%s127 + $0x120] sm:$0xff]
    %v1432 = vld [vmem:[%s127 + $0x128] sm:$0xff]
    %v1433 = vld [vmem:[%s127 + $0x138] sm:$0xff]
    %v1434 = vld [vmem:[%s127 + $0x140] sm:$0xff]
    %v1435 = vld [vmem:[%s127 + $0x150] sm:$0xff]
    %v1436 = vld [vmem:[%s127 + $0x158] sm:$0xff]
    %v1437 = vld [vmem:[%s127 + $0x168] sm:$0xff]
    %v1438 = vld [vmem:[%s127 + $0x170] sm:$0xff]
    %v1439 = vstv %s1406
    %v1440 = vmul.f32 %v1439, %v1407
    %v1441 = vmul.f32 %v1439, %v1408
    %v1442 = vmul.f32 %v1439, %v1409
    %v1443 = vmul.f32 %v1439, %v1410
    %v1444 = vmul.f32 %v1439, %v1411
    %v1445 = vmul.f32 %v1439, %v1412
    %v1446 = vmul.f32 %v1439, %v1413
    %v1447 = vmul.f32 %v1439, %v1414
    %v1448 = vmul.f32 %v1439, %v1415
    %v1449 = vmul.f32 %v1439, %v1416
    %v1450 = vmul.f32 %v1439, %v1417
    %v1451 = vmul.f32 %v1439, %v1418
    %v1452 = vmul.f32 %v1439, %v1419
    %v1453 = vmul.f32 %v1439, %v1420
    %v1454 = vmul.f32 %v1439, %v1421
    %v1455 = vmul.f32 %v1439, %v1422
    %v1456 = vmul.f32 %v1439, %v1423
    %v1457 = vmul.f32 %v1439, %v1424
    %v1458 = vmul.f32 %v1439, %v1425
    %v1459 = vmul.f32 %v1439, %v1426
    %v1460 = vmul.f32 %v1439, %v1427
    %v1461 = vmul.f32 %v1439, %v1428
    %v1462 = vmul.f32 %v1439, %v1429
    %v1463 = vmul.f32 %v1439, %v1430
    %v1464 = vmul.f32 %v1439, %v1431
    %v1465 = vmul.f32 %v1439, %v1432
    %v1466 = vmul.f32 %v1439, %v1433
    %v1467 = vmul.f32 %v1439, %v1434
    %v1468 = vmul.f32 %v1439, %v1435
    %v1469 = vmul.f32 %v1439, %v1436
    %v1470 = vmul.f32 %v1439, %v1437
    %v1471 = vmul.f32 %v1439, %v1438
    %v1472 = vadd.f32 %v1374, %v1440
    %v1473 = vadd.f32 %v1375, %v1441
    %v1474 = vadd.f32 %v1376, %v1442
    %v1475 = vadd.f32 %v1377, %v1443
    %v1476 = vadd.f32 %v1378, %v1444
    %v1477 = vadd.f32 %v1379, %v1445
    %v1478 = vadd.f32 %v1380, %v1446
    %v1479 = vadd.f32 %v1381, %v1447
    %v1480 = vadd.f32 %v1382, %v1448
    %v1481 = vadd.f32 %v1383, %v1449
    %v1482 = vadd.f32 %v1384, %v1450
    %v1483 = vadd.f32 %v1385, %v1451
    %v1484 = vadd.f32 %v1386, %v1452
    %v1485 = vadd.f32 %v1387, %v1453
    %v1486 = vadd.f32 %v1388, %v1454
    %v1487 = vadd.f32 %v1389, %v1455
    %v1488 = vadd.f32 %v1390, %v1456
    %v1489 = vadd.f32 %v1391, %v1457
    %v1490 = vadd.f32 %v1392, %v1458
    %v1491 = vadd.f32 %v1393, %v1459
    %v1492 = vadd.f32 %v1394, %v1460
    %v1493 = vadd.f32 %v1395, %v1461
    %v1494 = vadd.f32 %v1396, %v1462
    %v1495 = vadd.f32 %v1397, %v1463
    %v1496 = vadd.f32 %v1398, %v1464
    %v1497 = vadd.f32 %v1399, %v1465
    %v1498 = vadd.f32 %v1400, %v1466
    %v1499 = vadd.f32 %v1401, %v1467
    %v1500 = vadd.f32 %v1402, %v1468
    %v1501 = vadd.f32 %v1403, %v1469
    %v1502 = vadd.f32 %v1404, %v1470
    %v1503 = vadd.f32 %v1405, %v1471
    %s1504 = sld [smem:[#allocation3 + $0x16]]
    %v1505 = vld [vmem:[%s127 + $0x1] sm:$0xff]
    %v1506 = vld [vmem:[%s127 + $0x9] sm:$0xff]
    %v1507 = vld [vmem:[%s127 + $0x19] sm:$0xff]
    %v1508 = vld [vmem:[%s127 + $0x21] sm:$0xff]
    %v1509 = vld [vmem:[%s127 + $0x31] sm:$0xff]
    %v1510 = vld [vmem:[%s127 + $0x39] sm:$0xff]
    %v1511 = vld [vmem:[%s127 + $0x49] sm:$0xff]
    %v1512 = vld [vmem:[%s127 + $0x51] sm:$0xff]
    %v1513 = vld [vmem:[%s127 + $0x61] sm:$0xff]
    %v1514 = vld [vmem:[%s127 + $0x69] sm:$0xff]
    %v1515 = vld [vmem:[%s127 + $0x79] sm:$0xff]
    %v1516 = vld [vmem:[%s127 + $0x81] sm:$0xff]
    %v1517 = vld [vmem:[%s127 + $0x91] sm:$0xff]
    %v1518 = vld [vmem:[%s127 + $0x99] sm:$0xff]
    %v1519 = vld [vmem:[%s127 + $0xa9] sm:$0xff]
    %v1520 = vld [vmem:[%s127 + $0xb1] sm:$0xff]
    %v1521 = vld [vmem:[%s127 + $0xc1] sm:$0xff]
    %v1522 = vld [vmem:[%s127 + $0xc9] sm:$0xff]
    %v1523 = vld [vmem:[%s127 + $0xd9] sm:$0xff]
    %v1524 = vld [vmem:[%s127 + $0xe1] sm:$0xff]
    %v1525 = vld [vmem:[%s127 + $0xf1] sm:$0xff]
    %v1526 = vld [vmem:[%s127 + $0xf9] sm:$0xff]
    %v1527 = vld [vmem:[%s127 + $0x109] sm:$0xff]
    %v1528 = vld [vmem:[%s127 + $0x111] sm:$0xff]
    %v1529 = vld [vmem:[%s127 + $0x121] sm:$0xff]
    %v1530 = vld [vmem:[%s127 + $0x129] sm:$0xff]
    %v1531 = vld [vmem:[%s127 + $0x139] sm:$0xff]
    %v1532 = vld [vmem:[%s127 + $0x141] sm:$0xff]
    %v1533 = vld [vmem:[%s127 + $0x151] sm:$0xff]
    %v1534 = vld [vmem:[%s127 + $0x159] sm:$0xff]
    %v1535 = vld [vmem:[%s127 + $0x169] sm:$0xff]
    %v1536 = vld [vmem:[%s127 + $0x171] sm:$0xff]
    %v1537 = vstv %s1504
    %v1538 = vmul.f32 %v1537, %v1505
    %v1539 = vmul.f32 %v1537, %v1506
    %v1540 = vmul.f32 %v1537, %v1507
    %v1541 = vmul.f32 %v1537, %v1508
    %v1542 = vmul.f32 %v1537, %v1509
    %v1543 = vmul.f32 %v1537, %v1510
    %v1544 = vmul.f32 %v1537, %v1511
    %v1545 = vmul.f32 %v1537, %v1512
    %v1546 = vmul.f32 %v1537, %v1513
    %v1547 = vmul.f32 %v1537, %v1514
    %v1548 = vmul.f32 %v1537, %v1515
    %v1549 = vmul.f32 %v1537, %v1516
    %v1550 = vmul.f32 %v1537, %v1517
    %v1551 = vmul.f32 %v1537, %v1518
    %v1552 = vmul.f32 %v1537, %v1519
    %v1553 = vmul.f32 %v1537, %v1520
    %v1554 = vmul.f32 %v1537, %v1521
    %v1555 = vmul.f32 %v1537, %v1522
    %v1556 = vmul.f32 %v1537, %v1523
    %v1557 = vmul.f32 %v1537, %v1524
    %v1558 = vmul.f32 %v1537, %v1525
    %v1559 = vmul.f32 %v1537, %v1526
    %v1560 = vmul.f32 %v1537, %v1527
    %v1561 = vmul.f32 %v1537, %v1528
    %v1562 = vmul.f32 %v1537, %v1529
    %v1563 = vmul.f32 %v1537, %v1530
    %v1564 = vmul.f32 %v1537, %v1531
    %v1565 = vmul.f32 %v1537, %v1532
    %v1566 = vmul.f32 %v1537, %v1533
    %v1567 = vmul.f32 %v1537, %v1534
    %v1568 = vmul.f32 %v1537, %v1535
    %v1569 = vmul.f32 %v1537, %v1536
    %v1570 = vadd.f32 %v1472, %v1538
    %v1571 = vadd.f32 %v1473, %v1539
    %v1572 = vadd.f32 %v1474, %v1540
    %v1573 = vadd.f32 %v1475, %v1541
    %v1574 = vadd.f32 %v1476, %v1542
    %v1575 = vadd.f32 %v1477, %v1543
    %v1576 = vadd.f32 %v1478, %v1544
    %v1577 = vadd.f32 %v1479, %v1545
    %v1578 = vadd.f32 %v1480, %v1546
    %v1579 = vadd.f32 %v1481, %v1547
    %v1580 = vadd.f32 %v1482, %v1548
    %v1581 = vadd.f32 %v1483, %v1549
    %v1582 = vadd.f32 %v1484, %v1550
    %v1583 = vadd.f32 %v1485, %v1551
    %v1584 = vadd.f32 %v1486, %v1552
    %v1585 = vadd.f32 %v1487, %v1553
    %v1586 = vadd.f32 %v1488, %v1554
    %v1587 = vadd.f32 %v1489, %v1555
    %v1588 = vadd.f32 %v1490, %v1556
    %v1589 = vadd.f32 %v1491, %v1557
    %v1590 = vadd.f32 %v1492, %v1558
    %v1591 = vadd.f32 %v1493, %v1559
    %v1592 = vadd.f32 %v1494, %v1560
    %v1593 = vadd.f32 %v1495, %v1561
    %v1594 = vadd.f32 %v1496, %v1562
    %v1595 = vadd.f32 %v1497, %v1563
    %v1596 = vadd.f32 %v1498, %v1564
    %v1597 = vadd.f32 %v1499, %v1565
    %v1598 = vadd.f32 %v1500, %v1566
    %v1599 = vadd.f32 %v1501, %v1567
    %v1600 = vadd.f32 %v1502, %v1568
    %v1601 = vadd.f32 %v1503, %v1569
    %1602 = vst [vmem:[%s127 + $0x1] sm:$0xff] %v1570
    %1603 = vst [vmem:[%s127 + $0x9] sm:$0xff] %v1571
    %1604 = vst [vmem:[%s127 + $0x19] sm:$0xff] %v1572
    %1605 = vst [vmem:[%s127 + $0x21] sm:$0xff] %v1573
    %1606 = vst [vmem:[%s127 + $0x31] sm:$0xff] %v1574
    %1607 = vst [vmem:[%s127 + $0x39] sm:$0xff] %v1575
    %1608 = vst [vmem:[%s127 + $0x49] sm:$0xff] %v1576
    %1609 = vst [vmem:[%s127 + $0x51] sm:$0xff] %v1577
    %1610 = vst [vmem:[%s127 + $0x61] sm:$0xff] %v1578
    %1611 = vst [vmem:[%s127 + $0x69] sm:$0xff] %v1579
    %1612 = vst [vmem:[%s127 + $0x79] sm:$0xff] %v1580
    %1613 = vst [vmem:[%s127 + $0x81] sm:$0xff] %v1581
    %1614 = vst [vmem:[%s127 + $0x91] sm:$0xff] %v1582
    %1615 = vst [vmem:[%s127 + $0x99] sm:$0xff] %v1583
    %1616 = vst [vmem:[%s127 + $0xa9] sm:$0xff] %v1584
    %1617 = vst [vmem:[%s127 + $0xb1] sm:$0xff] %v1585
    %1618 = vst [vmem:[%s127 + $0xc1] sm:$0xff] %v1586
    %1619 = vst [vmem:[%s127 + $0xc9] sm:$0xff] %v1587
    %1620 = vst [vmem:[%s127 + $0xd9] sm:$0xff] %v1588
    %1621 = vst [vmem:[%s127 + $0xe1] sm:$0xff] %v1589
    %1622 = vst [vmem:[%s127 + $0xf1] sm:$0xff] %v1590
    %1623 = vst [vmem:[%s127 + $0xf9] sm:$0xff] %v1591
    %1624 = vst [vmem:[%s127 + $0x109] sm:$0xff] %v1592
    %1625 = vst [vmem:[%s127 + $0x111] sm:$0xff] %v1593
    %1626 = vst [vmem:[%s127 + $0x121] sm:$0xff] %v1594
    %1627 = vst [vmem:[%s127 + $0x129] sm:$0xff] %v1595
    %1628 = vst [vmem:[%s127 + $0x139] sm:$0xff] %v1596
    %1629 = vst [vmem:[%s127 + $0x141] sm:$0xff] %v1597
    %1630 = vst [vmem:[%s127 + $0x151] sm:$0xff] %v1598
    %1631 = vst [vmem:[%s127 + $0x159] sm:$0xff] %v1599
    %1632 = vst [vmem:[%s127 + $0x169] sm:$0xff] %v1600
    %1633 = vst [vmem:[%s127 + $0x171] sm:$0xff] %v1601
    %s1634 = sld [smem:[#allocation3 + $0x1b]]
    %v1635 = vld [vmem:[#allocation2] sm:$0xff]
    %v1636 = vld [vmem:[#allocation2 + $0x8] sm:$0xff]
    %v1637 = vld [vmem:[#allocation2 + $0x18] sm:$0xff]
    %v1638 = vld [vmem:[#allocation2 + $0x20] sm:$0xff]
    %v1639 = vld [vmem:[#allocation2 + $0x30] sm:$0xff]
    %v1640 = vld [vmem:[#allocation2 + $0x38] sm:$0xff]
    %v1641 = vld [vmem:[#allocation2 + $0x48] sm:$0xff]
    %v1642 = vld [vmem:[#allocation2 + $0x50] sm:$0xff]
    %v1643 = vld [vmem:[#allocation2 + $0x60] sm:$0xff]
    %v1644 = vld [vmem:[#allocation2 + $0x68] sm:$0xff]
    %v1645 = vld [vmem:[#allocation2 + $0x78] sm:$0xff]
    %v1646 = vld [vmem:[#allocation2 + $0x80] sm:$0xff]
    %v1647 = vld [vmem:[#allocation2 + $0x90] sm:$0xff]
    %v1648 = vld [vmem:[#allocation2 + $0x98] sm:$0xff]
    %v1649 = vld [vmem:[#allocation2 + $0xa8] sm:$0xff]
    %v1650 = vld [vmem:[#allocation2 + $0xb0] sm:$0xff]
    %v1651 = vld [vmem:[#allocation2 + $0xc0] sm:$0xff]
    %v1652 = vld [vmem:[#allocation2 + $0xc8] sm:$0xff]
    %v1653 = vld [vmem:[#allocation2 + $0xd8] sm:$0xff]
    %v1654 = vld [vmem:[#allocation2 + $0xe0] sm:$0xff]
    %v1655 = vld [vmem:[#allocation2 + $0xf0] sm:$0xff]
    %v1656 = vld [vmem:[#allocation2 + $0xf8] sm:$0xff]
    %v1657 = vld [vmem:[#allocation2 + $0x108] sm:$0xff]
    %v1658 = vld [vmem:[#allocation2 + $0x110] sm:$0xff]
    %v1659 = vld [vmem:[#allocation2 + $0x120] sm:$0xff]
    %v1660 = vld [vmem:[#allocation2 + $0x128] sm:$0xff]
    %v1661 = vld [vmem:[#allocation2 + $0x138] sm:$0xff]
    %v1662 = vld [vmem:[#allocation2 + $0x140] sm:$0xff]
    %v1663 = vld [vmem:[#allocation2 + $0x150] sm:$0xff]
    %v1664 = vld [vmem:[#allocation2 + $0x158] sm:$0xff]
    %v1665 = vld [vmem:[#allocation2 + $0x168] sm:$0xff]
    %v1666 = vld [vmem:[#allocation2 + $0x170] sm:$0xff]
    %v1667 = vstv %s1634
    %v1668 = vmul.f32 %v1667, %v1635
    %v1669 = vmul.f32 %v1667, %v1636
    %v1670 = vmul.f32 %v1667, %v1637
    %v1671 = vmul.f32 %v1667, %v1638
    %v1672 = vmul.f32 %v1667, %v1639
    %v1673 = vmul.f32 %v1667, %v1640
    %v1674 = vmul.f32 %v1667, %v1641
    %v1675 = vmul.f32 %v1667, %v1642
    %v1676 = vmul.f32 %v1667, %v1643
    %v1677 = vmul.f32 %v1667, %v1644
    %v1678 = vmul.f32 %v1667, %v1645
    %v1679 = vmul.f32 %v1667, %v1646
    %v1680 = vmul.f32 %v1667, %v1647
    %v1681 = vmul.f32 %v1667, %v1648
    %v1682 = vmul.f32 %v1667, %v1649
    %v1683 = vmul.f32 %v1667, %v1650
    %v1684 = vmul.f32 %v1667, %v1651
    %v1685 = vmul.f32 %v1667, %v1652
    %v1686 = vmul.f32 %v1667, %v1653
    %v1687 = vmul.f32 %v1667, %v1654
    %v1688 = vmul.f32 %v1667, %v1655
    %v1689 = vmul.f32 %v1667, %v1656
    %v1690 = vmul.f32 %v1667, %v1657
    %v1691 = vmul.f32 %v1667, %v1658
    %v1692 = vmul.f32 %v1667, %v1659
    %v1693 = vmul.f32 %v1667, %v1660
    %v1694 = vmul.f32 %v1667, %v1661
    %v1695 = vmul.f32 %v1667, %v1662
    %v1696 = vmul.f32 %v1667, %v1663
    %v1697 = vmul.f32 %v1667, %v1664
    %v1698 = vmul.f32 %v1667, %v1665
    %v1699 = vmul.f32 %v1667, %v1666
    %s1700 = sld [smem:[#allocation8 + $0x3]]
    %v1701 = vstv %s1700
    %v1702 = vadd.f32 %v1668, %v1701
    %v1703 = vadd.f32 %v1669, %v1701
    %v1704 = vadd.f32 %v1670, %v1701
    %v1705 = vadd.f32 %v1671, %v1701
    %v1706 = vadd.f32 %v1672, %v1701
    %v1707 = vadd.f32 %v1673, %v1701
    %v1708 = vadd.f32 %v1674, %v1701
    %v1709 = vadd.f32 %v1675, %v1701
    %v1710 = vadd.f32 %v1676, %v1701
    %v1711 = vadd.f32 %v1677, %v1701
    %v1712 = vadd.f32 %v1678, %v1701
    %v1713 = vadd.f32 %v1679, %v1701
    %v1714 = vadd.f32 %v1680, %v1701
    %v1715 = vadd.f32 %v1681, %v1701
    %v1716 = vadd.f32 %v1682, %v1701
    %v1717 = vadd.f32 %v1683, %v1701
    %v1718 = vadd.f32 %v1684, %v1701
    %v1719 = vadd.f32 %v1685, %v1701
    %v1720 = vadd.f32 %v1686, %v1701
    %v1721 = vadd.f32 %v1687, %v1701
    %v1722 = vadd.f32 %v1688, %v1701
    %v1723 = vadd.f32 %v1689, %v1701
    %v1724 = vadd.f32 %v1690, %v1701
    %v1725 = vadd.f32 %v1691, %v1701
    %v1726 = vadd.f32 %v1692, %v1701
    %v1727 = vadd.f32 %v1693, %v1701
    %v1728 = vadd.f32 %v1694, %v1701
    %v1729 = vadd.f32 %v1695, %v1701
    %v1730 = vadd.f32 %v1696, %v1701
    %v1731 = vadd.f32 %v1697, %v1701
    %v1732 = vadd.f32 %v1698, %v1701
    %v1733 = vadd.f32 %v1699, %v1701
    %s1734 = sld [smem:[#allocation3 + $0x1c]]
    %v1735 = vld [vmem:[#allocation2 + $0x1] sm:$0xff]
    %v1736 = vld [vmem:[#allocation2 + $0x9] sm:$0xff]
    %v1737 = vld [vmem:[#allocation2 + $0x19] sm:$0xff]
    %v1738 = vld [vmem:[#allocation2 + $0x21] sm:$0xff]
    %v1739 = vld [vmem:[#allocation2 + $0x31] sm:$0xff]
    %v1740 = vld [vmem:[#allocation2 + $0x39] sm:$0xff]
    %v1741 = vld [vmem:[#allocation2 + $0x49] sm:$0xff]
    %v1742 = vld [vmem:[#allocation2 + $0x51] sm:$0xff]
    %v1743 = vld [vmem:[#allocation2 + $0x61] sm:$0xff]
    %v1744 = vld [vmem:[#allocation2 + $0x69] sm:$0xff]
    %v1745 = vld [vmem:[#allocation2 + $0x79] sm:$0xff]
    %v1746 = vld [vmem:[#allocation2 + $0x81] sm:$0xff]
    %v1747 = vld [vmem:[#allocation2 + $0x91] sm:$0xff]
    %v1748 = vld [vmem:[#allocation2 + $0x99] sm:$0xff]
    %v1749 = vld [vmem:[#allocation2 + $0xa9] sm:$0xff]
    %v1750 = vld [vmem:[#allocation2 + $0xb1] sm:$0xff]
    %v1751 = vld [vmem:[#allocation2 + $0xc1] sm:$0xff]
    %v1752 = vld [vmem:[#allocation2 + $0xc9] sm:$0xff]
    %v1753 = vld [vmem:[#allocation2 + $0xd9] sm:$0xff]
    %v1754 = vld [vmem:[#allocation2 + $0xe1] sm:$0xff]
    %v1755 = vld [vmem:[#allocation2 + $0xf1] sm:$0xff]
    %v1756 = vld [vmem:[#allocation2 + $0xf9] sm:$0xff]
    %v1757 = vld [vmem:[#allocation2 + $0x109] sm:$0xff]
    %v1758 = vld [vmem:[#allocation2 + $0x111] sm:$0xff]
    %v1759 = vld [vmem:[#allocation2 + $0x121] sm:$0xff]
    %v1760 = vld [vmem:[#allocation2 + $0x129] sm:$0xff]
    %v1761 = vld [vmem:[#allocation2 + $0x139] sm:$0xff]
    %v1762 = vld [vmem:[#allocation2 + $0x141] sm:$0xff]
    %v1763 = vld [vmem:[#allocation2 + $0x151] sm:$0xff]
    %v1764 = vld [vmem:[#allocation2 + $0x159] sm:$0xff]
    %v1765 = vld [vmem:[#allocation2 + $0x169] sm:$0xff]
    %v1766 = vld [vmem:[#allocation2 + $0x171] sm:$0xff]
    %v1767 = vstv %s1734
    %v1768 = vmul.f32 %v1767, %v1735
    %v1769 = vmul.f32 %v1767, %v1736
    %v1770 = vmul.f32 %v1767, %v1737
    %v1771 = vmul.f32 %v1767, %v1738
    %v1772 = vmul.f32 %v1767, %v1739
    %v1773 = vmul.f32 %v1767, %v1740
    %v1774 = vmul.f32 %v1767, %v1741
    %v1775 = vmul.f32 %v1767, %v1742
    %v1776 = vmul.f32 %v1767, %v1743
    %v1777 = vmul.f32 %v1767, %v1744
    %v1778 = vmul.f32 %v1767, %v1745
    %v1779 = vmul.f32 %v1767, %v1746
    %v1780 = vmul.f32 %v1767, %v1747
    %v1781 = vmul.f32 %v1767, %v1748
    %v1782 = vmul.f32 %v1767, %v1749
    %v1783 = vmul.f32 %v1767, %v1750
    %v1784 = vmul.f32 %v1767, %v1751
    %v1785 = vmul.f32 %v1767, %v1752
    %v1786 = vmul.f32 %v1767, %v1753
    %v1787 = vmul.f32 %v1767, %v1754
    %v1788 = vmul.f32 %v1767, %v1755
    %v1789 = vmul.f32 %v1767, %v1756
    %v1790 = vmul.f32 %v1767, %v1757
    %v1791 = vmul.f32 %v1767, %v1758
    %v1792 = vmul.f32 %v1767, %v1759
    %v1793 = vmul.f32 %v1767, %v1760
    %v1794 = vmul.f32 %v1767, %v1761
    %v1795 = vmul.f32 %v1767, %v1762
    %v1796 = vmul.f32 %v1767, %v1763
    %v1797 = vmul.f32 %v1767, %v1764
    %v1798 = vmul.f32 %v1767, %v1765
    %v1799 = vmul.f32 %v1767, %v1766
    %v1800 = vadd.f32 %v1702, %v1768
    %v1801 = vadd.f32 %v1703, %v1769
    %v1802 = vadd.f32 %v1704, %v1770
    %v1803 = vadd.f32 %v1705, %v1771
    %v1804 = vadd.f32 %v1706, %v1772
    %v1805 = vadd.f32 %v1707, %v1773
    %v1806 = vadd.f32 %v1708, %v1774
    %v1807 = vadd.f32 %v1709, %v1775
    %v1808 = vadd.f32 %v1710, %v1776
    %v1809 = vadd.f32 %v1711, %v1777
    %v1810 = vadd.f32 %v1712, %v1778
    %v1811 = vadd.f32 %v1713, %v1779
    %v1812 = vadd.f32 %v1714, %v1780
    %v1813 = vadd.f32 %v1715, %v1781
    %v1814 = vadd.f32 %v1716, %v1782
    %v1815 = vadd.f32 %v1717, %v1783
    %v1816 = vadd.f32 %v1718, %v1784
    %v1817 = vadd.f32 %v1719, %v1785
    %v1818 = vadd.f32 %v1720, %v1786
    %v1819 = vadd.f32 %v1721, %v1787
    %v1820 = vadd.f32 %v1722, %v1788
    %v1821 = vadd.f32 %v1723, %v1789
    %v1822 = vadd.f32 %v1724, %v1790
    %v1823 = vadd.f32 %v1725, %v1791
    %v1824 = vadd.f32 %v1726, %v1792
    %v1825 = vadd.f32 %v1727, %v1793
    %v1826 = vadd.f32 %v1728, %v1794
    %v1827 = vadd.f32 %v1729, %v1795
    %v1828 = vadd.f32 %v1730, %v1796
    %v1829 = vadd.f32 %v1731, %v1797
    %v1830 = vadd.f32 %v1732, %v1798
    %v1831 = vadd.f32 %v1733, %v1799
    %s1832 = sld [smem:[#allocation3 + $0x1d]]
    %v1833 = vld [vmem:[#allocation2 + $0x2] sm:$0xff]
    %v1834 = vld [vmem:[#allocation2 + $0xa] sm:$0xff]
    %v1835 = vld [vmem:[#allocation2 + $0x1a] sm:$0xff]
    %v1836 = vld [vmem:[#allocation2 + $0x22] sm:$0xff]
    %v1837 = vld [vmem:[#allocation2 + $0x32] sm:$0xff]
    %v1838 = vld [vmem:[#allocation2 + $0x3a] sm:$0xff]
    %v1839 = vld [vmem:[#allocation2 + $0x4a] sm:$0xff]
    %v1840 = vld [vmem:[#allocation2 + $0x52] sm:$0xff]
    %v1841 = vld [vmem:[#allocation2 + $0x62] sm:$0xff]
    %v1842 = vld [vmem:[#allocation2 + $0x6a] sm:$0xff]
    %v1843 = vld [vmem:[#allocation2 + $0x7a] sm:$0xff]
    %v1844 = vld [vmem:[#allocation2 + $0x82] sm:$0xff]
    %v1845 = vld [vmem:[#allocation2 + $0x92] sm:$0xff]
    %v1846 = vld [vmem:[#allocation2 + $0x9a] sm:$0xff]
    %v1847 = vld [vmem:[#allocation2 + $0xaa] sm:$0xff]
    %v1848 = vld [vmem:[#allocation2 + $0xb2] sm:$0xff]
    %v1849 = vld [vmem:[#allocation2 + $0xc2] sm:$0xff]
    %v1850 = vld [vmem:[#allocation2 + $0xca] sm:$0xff]
    %v1851 = vld [vmem:[#allocation2 + $0xda] sm:$0xff]
    %v1852 = vld [vmem:[#allocation2 + $0xe2] sm:$0xff]
    %v1853 = vld [vmem:[#allocation2 + $0xf2] sm:$0xff]
    %v1854 = vld [vmem:[#allocation2 + $0xfa] sm:$0xff]
    %v1855 = vld [vmem:[#allocation2 + $0x10a] sm:$0xff]
    %v1856 = vld [vmem:[#allocation2 + $0x112] sm:$0xff]
    %v1857 = vld [vmem:[#allocation2 + $0x122] sm:$0xff]
    %v1858 = vld [vmem:[#allocation2 + $0x12a] sm:$0xff]
    %v1859 = vld [vmem:[#allocation2 + $0x13a] sm:$0xff]
    %v1860 = vld [vmem:[#allocation2 + $0x142] sm:$0xff]
    %v1861 = vld [vmem:[#allocation2 + $0x152] sm:$0xff]
    %v1862 = vld [vmem:[#allocation2 + $0x15a] sm:$0xff]
    %v1863 = vld [vmem:[#allocation2 + $0x16a] sm:$0xff]
    %v1864 = vld [vmem:[#allocation2 + $0x172] sm:$0xff]
    %v1865 = vstv %s1832
    %v1866 = vmul.f32 %v1865, %v1833
    %v1867 = vmul.f32 %v1865, %v1834
    %v1868 = vmul.f32 %v1865, %v1835
    %v1869 = vmul.f32 %v1865, %v1836
    %v1870 = vmul.f32 %v1865, %v1837
    %v1871 = vmul.f32 %v1865, %v1838
    %v1872 = vmul.f32 %v1865, %v1839
    %v1873 = vmul.f32 %v1865, %v1840
    %v1874 = vmul.f32 %v1865, %v1841
    %v1875 = vmul.f32 %v1865, %v1842
    %v1876 = vmul.f32 %v1865, %v1843
    %v1877 = vmul.f32 %v1865, %v1844
    %v1878 = vmul.f32 %v1865, %v1845
    %v1879 = vmul.f32 %v1865, %v1846
    %v1880 = vmul.f32 %v1865, %v1847
    %v1881 = vmul.f32 %v1865, %v1848
    %v1882 = vmul.f32 %v1865, %v1849
    %v1883 = vmul.f32 %v1865, %v1850
    %v1884 = vmul.f32 %v1865, %v1851
    %v1885 = vmul.f32 %v1865, %v1852
    %v1886 = vmul.f32 %v1865, %v1853
    %v1887 = vmul.f32 %v1865, %v1854
    %v1888 = vmul.f32 %v1865, %v1855
    %v1889 = vmul.f32 %v1865, %v1856
    %v1890 = vmul.f32 %v1865, %v1857
    %v1891 = vmul.f32 %v1865, %v1858
    %v1892 = vmul.f32 %v1865, %v1859
    %v1893 = vmul.f32 %v1865, %v1860
    %v1894 = vmul.f32 %v1865, %v1861
    %v1895 = vmul.f32 %v1865, %v1862
    %v1896 = vmul.f32 %v1865, %v1863
    %v1897 = vmul.f32 %v1865, %v1864
    %v1898 = vadd.f32 %v1800, %v1866
    %v1899 = vadd.f32 %v1801, %v1867
    %v1900 = vadd.f32 %v1802, %v1868
    %v1901 = vadd.f32 %v1803, %v1869
    %v1902 = vadd.f32 %v1804, %v1870
    %v1903 = vadd.f32 %v1805, %v1871
    %v1904 = vadd.f32 %v1806, %v1872
    %v1905 = vadd.f32 %v1807, %v1873
    %v1906 = vadd.f32 %v1808, %v1874
    %v1907 = vadd.f32 %v1809, %v1875
    %v1908 = vadd.f32 %v1810, %v1876
    %v1909 = vadd.f32 %v1811, %v1877
    %v1910 = vadd.f32 %v1812, %v1878
    %v1911 = vadd.f32 %v1813, %v1879
    %v1912 = vadd.f32 %v1814, %v1880
    %v1913 = vadd.f32 %v1815, %v1881
    %v1914 = vadd.f32 %v1816, %v1882
    %v1915 = vadd.f32 %v1817, %v1883
    %v1916 = vadd.f32 %v1818, %v1884
    %v1917 = vadd.f32 %v1819, %v1885
    %v1918 = vadd.f32 %v1820, %v1886
    %v1919 = vadd.f32 %v1821, %v1887
    %v1920 = vadd.f32 %v1822, %v1888
    %v1921 = vadd.f32 %v1823, %v1889
    %v1922 = vadd.f32 %v1824, %v1890
    %v1923 = vadd.f32 %v1825, %v1891
    %v1924 = vadd.f32 %v1826, %v1892
    %v1925 = vadd.f32 %v1827, %v1893
    %v1926 = vadd.f32 %v1828, %v1894
    %v1927 = vadd.f32 %v1829, %v1895
    %v1928 = vadd.f32 %v1830, %v1896
    %v1929 = vadd.f32 %v1831, %v1897
    %s1930 = sld [smem:[#allocation3 + $0x1e]]
    %v1931 = vld [vmem:[%s127] sm:$0xff]
    %v1932 = vld [vmem:[%s127 + $0x8] sm:$0xff]
    %v1933 = vld [vmem:[%s127 + $0x18] sm:$0xff]
    %v1934 = vld [vmem:[%s127 + $0x20] sm:$0xff]
    %v1935 = vld [vmem:[%s127 + $0x30] sm:$0xff]
    %v1936 = vld [vmem:[%s127 + $0x38] sm:$0xff]
    %v1937 = vld [vmem:[%s127 + $0x48] sm:$0xff]
    %v1938 = vld [vmem:[%s127 + $0x50] sm:$0xff]
    %v1939 = vld [vmem:[%s127 + $0x60] sm:$0xff]
    %v1940 = vld [vmem:[%s127 + $0x68] sm:$0xff]
    %v1941 = vld [vmem:[%s127 + $0x78] sm:$0xff]
    %v1942 = vld [vmem:[%s127 + $0x80] sm:$0xff]
    %v1943 = vld [vmem:[%s127 + $0x90] sm:$0xff]
    %v1944 = vld [vmem:[%s127 + $0x98] sm:$0xff]
    %v1945 = vld [vmem:[%s127 + $0xa8] sm:$0xff]
    %v1946 = vld [vmem:[%s127 + $0xb0] sm:$0xff]
    %v1947 = vld [vmem:[%s127 + $0xc0] sm:$0xff]
    %v1948 = vld [vmem:[%s127 + $0xc8] sm:$0xff]
    %v1949 = vld [vmem:[%s127 + $0xd8] sm:$0xff]
    %v1950 = vld [vmem:[%s127 + $0xe0] sm:$0xff]
    %v1951 = vld [vmem:[%s127 + $0xf0] sm:$0xff]
    %v1952 = vld [vmem:[%s127 + $0xf8] sm:$0xff]
    %v1953 = vld [vmem:[%s127 + $0x108] sm:$0xff]
    %v1954 = vld [vmem:[%s127 + $0x110] sm:$0xff]
    %v1955 = vld [vmem:[%s127 + $0x120] sm:$0xff]
    %v1956 = vld [vmem:[%s127 + $0x128] sm:$0xff]
    %v1957 = vld [vmem:[%s127 + $0x138] sm:$0xff]
    %v1958 = vld [vmem:[%s127 + $0x140] sm:$0xff]
    %v1959 = vld [vmem:[%s127 + $0x150] sm:$0xff]
    %v1960 = vld [vmem:[%s127 + $0x158] sm:$0xff]
    %v1961 = vld [vmem:[%s127 + $0x168] sm:$0xff]
    %v1962 = vld [vmem:[%s127 + $0x170] sm:$0xff]
    %v1963 = vstv %s1930
    %v1964 = vmul.f32 %v1963, %v1931
    %v1965 = vmul.f32 %v1963, %v1932
    %v1966 = vmul.f32 %v1963, %v1933
    %v1967 = vmul.f32 %v1963, %v1934
    %v1968 = vmul.f32 %v1963, %v1935
    %v1969 = vmul.f32 %v1963, %v1936
    %v1970 = vmul.f32 %v1963, %v1937
    %v1971 = vmul.f32 %v1963, %v1938
    %v1972 = vmul.f32 %v1963, %v1939
    %v1973 = vmul.f32 %v1963, %v1940
    %v1974 = vmul.f32 %v1963, %v1941
    %v1975 = vmul.f32 %v1963, %v1942
    %v1976 = vmul.f32 %v1963, %v1943
    %v1977 = vmul.f32 %v1963, %v1944
    %v1978 = vmul.f32 %v1963, %v1945
    %v1979 = vmul.f32 %v1963, %v1946
    %v1980 = vmul.f32 %v1963, %v1947
    %v1981 = vmul.f32 %v1963, %v1948
    %v1982 = vmul.f32 %v1963, %v1949
    %v1983 = vmul.f32 %v1963, %v1950
    %v1984 = vmul.f32 %v1963, %v1951
    %v1985 = vmul.f32 %v1963, %v1952
    %v1986 = vmul.f32 %v1963, %v1953
    %v1987 = vmul.f32 %v1963, %v1954
    %v1988 = vmul.f32 %v1963, %v1955
    %v1989 = vmul.f32 %v1963, %v1956
    %v1990 = vmul.f32 %v1963, %v1957
    %v1991 = vmul.f32 %v1963, %v1958
    %v1992 = vmul.f32 %v1963, %v1959
    %v1993 = vmul.f32 %v1963, %v1960
    %v1994 = vmul.f32 %v1963, %v1961
    %v1995 = vmul.f32 %v1963, %v1962
    %v1996 = vadd.f32 %v1898, %v1964
    %v1997 = vadd.f32 %v1899, %v1965
    %v1998 = vadd.f32 %v1900, %v1966
    %v1999 = vadd.f32 %v1901, %v1967
    %v2000 = vadd.f32 %v1902, %v1968
    %v2001 = vadd.f32 %v1903, %v1969
    %v2002 = vadd.f32 %v1904, %v1970
    %v2003 = vadd.f32 %v1905, %v1971
    %v2004 = vadd.f32 %v1906, %v1972
    %v2005 = vadd.f32 %v1907, %v1973
    %v2006 = vadd.f32 %v1908, %v1974
    %v2007 = vadd.f32 %v1909, %v1975
    %v2008 = vadd.f32 %v1910, %v1976
    %v2009 = vadd.f32 %v1911, %v1977
    %v2010 = vadd.f32 %v1912, %v1978
    %v2011 = vadd.f32 %v1913, %v1979
    %v2012 = vadd.f32 %v1914, %v1980
    %v2013 = vadd.f32 %v1915, %v1981
    %v2014 = vadd.f32 %v1916, %v1982
    %v2015 = vadd.f32 %v1917, %v1983
    %v2016 = vadd.f32 %v1918, %v1984
    %v2017 = vadd.f32 %v1919, %v1985
    %v2018 = vadd.f32 %v1920, %v1986
    %v2019 = vadd.f32 %v1921, %v1987
    %v2020 = vadd.f32 %v1922, %v1988
    %v2021 = vadd.f32 %v1923, %v1989
    %v2022 = vadd.f32 %v1924, %v1990
    %v2023 = vadd.f32 %v1925, %v1991
    %v2024 = vadd.f32 %v1926, %v1992
    %v2025 = vadd.f32 %v1927, %v1993
    %v2026 = vadd.f32 %v1928, %v1994
    %v2027 = vadd.f32 %v1929, %v1995
    %s2028 = sld [smem:[#allocation3 + $0x1f]]
    %v2029 = vld [vmem:[%s127 + $0x1] sm:$0xff]
    %v2030 = vld [vmem:[%s127 + $0x9] sm:$0xff]
    %v2031 = vld [vmem:[%s127 + $0x19] sm:$0xff]
    %v2032 = vld [vmem:[%s127 + $0x21] sm:$0xff]
    %v2033 = vld [vmem:[%s127 + $0x31] sm:$0xff]
    %v2034 = vld [vmem:[%s127 + $0x39] sm:$0xff]
    %v2035 = vld [vmem:[%s127 + $0x49] sm:$0xff]
    %v2036 = vld [vmem:[%s127 + $0x51] sm:$0xff]
    %v2037 = vld [vmem:[%s127 + $0x61] sm:$0xff]
    %v2038 = vld [vmem:[%s127 + $0x69] sm:$0xff]
    %v2039 = vld [vmem:[%s127 + $0x79] sm:$0xff]
    %v2040 = vld [vmem:[%s127 + $0x81] sm:$0xff]
    %v2041 = vld [vmem:[%s127 + $0x91] sm:$0xff]
    %v2042 = vld [vmem:[%s127 + $0x99] sm:$0xff]
    %v2043 = vld [vmem:[%s127 + $0xa9] sm:$0xff]
    %v2044 = vld [vmem:[%s127 + $0xb1] sm:$0xff]
    %v2045 = vld [vmem:[%s127 + $0xc1] sm:$0xff]
    %v2046 = vld [vmem:[%s127 + $0xc9] sm:$0xff]
    %v2047 = vld [vmem:[%s127 + $0xd9] sm:$0xff]
    %v2048 = vld [vmem:[%s127 + $0xe1] sm:$0xff]
    %v2049 = vld [vmem:[%s127 + $0xf1] sm:$0xff]
    %v2050 = vld [vmem:[%s127 + $0xf9] sm:$0xff]
    %v2051 = vld [vmem:[%s127 + $0x109] sm:$0xff]
    %v2052 = vld [vmem:[%s127 + $0x111] sm:$0xff]
    %v2053 = vld [vmem:[%s127 + $0x121] sm:$0xff]
    %v2054 = vld [vmem:[%s127 + $0x129] sm:$0xff]
    %v2055 = vld [vmem:[%s127 + $0x139] sm:$0xff]
    %v2056 = vld [vmem:[%s127 + $0x141] sm:$0xff]
    %v2057 = vld [vmem:[%s127 + $0x151] sm:$0xff]
    %v2058 = vld [vmem:[%s127 + $0x159] sm:$0xff]
    %v2059 = vld [vmem:[%s127 + $0x169] sm:$0xff]
    %v2060 = vld [vmem:[%s127 + $0x171] sm:$0xff]
    %v2061 = vstv %s2028
    %v2062 = vmul.f32 %v2061, %v2029
    %v2063 = vmul.f32 %v2061, %v2030
    %v2064 = vmul.f32 %v2061, %v2031
    %v2065 = vmul.f32 %v2061, %v2032
    %v2066 = vmul.f32 %v2061, %v2033
    %v2067 = vmul.f32 %v2061, %v2034
    %v2068 = vmul.f32 %v2061, %v2035
    %v2069 = vmul.f32 %v2061, %v2036
    %v2070 = vmul.f32 %v2061, %v2037
    %v2071 = vmul.f32 %v2061, %v2038
    %v2072 = vmul.f32 %v2061, %v2039
    %v2073 = vmul.f32 %v2061, %v2040
    %v2074 = vmul.f32 %v2061, %v2041
    %v2075 = vmul.f32 %v2061, %v2042
    %v2076 = vmul.f32 %v2061, %v2043
    %v2077 = vmul.f32 %v2061, %v2044
    %v2078 = vmul.f32 %v2061, %v2045
    %v2079 = vmul.f32 %v2061, %v2046
    %v2080 = vmul.f32 %v2061, %v2047
    %v2081 = vmul.f32 %v2061, %v2048
    %v2082 = vmul.f32 %v2061, %v2049
    %v2083 = vmul.f32 %v2061, %v2050
    %v2084 = vmul.f32 %v2061, %v2051
    %v2085 = vmul.f32 %v2061, %v2052
    %v2086 = vmul.f32 %v2061, %v2053
    %v2087 = vmul.f32 %v2061, %v2054
    %v2088 = vmul.f32 %v2061, %v2055
    %v2089 = vmul.f32 %v2061, %v2056
    %v2090 = vmul.f32 %v2061, %v2057
    %v2091 = vmul.f32 %v2061, %v2058
    %v2092 = vmul.f32 %v2061, %v2059
    %v2093 = vmul.f32 %v2061, %v2060
    %v2094 = vadd.f32 %v1996, %v2062
    %v2095 = vadd.f32 %v1997, %v2063
    %v2096 = vadd.f32 %v1998, %v2064
    %v2097 = vadd.f32 %v1999, %v2065
    %v2098 = vadd.f32 %v2000, %v2066
    %v2099 = vadd.f32 %v2001, %v2067
    %v2100 = vadd.f32 %v2002, %v2068
    %v2101 = vadd.f32 %v2003, %v2069
    %v2102 = vadd.f32 %v2004, %v2070
    %v2103 = vadd.f32 %v2005, %v2071
    %v2104 = vadd.f32 %v2006, %v2072
    %v2105 = vadd.f32 %v2007, %v2073
    %v2106 = vadd.f32 %v2008, %v2074
    %v2107 = vadd.f32 %v2009, %v2075
    %v2108 = vadd.f32 %v2010, %v2076
    %v2109 = vadd.f32 %v2011, %v2077
    %v2110 = vadd.f32 %v2012, %v2078
    %v2111 = vadd.f32 %v2013, %v2079
    %v2112 = vadd.f32 %v2014, %v2080
    %v2113 = vadd.f32 %v2015, %v2081
    %v2114 = vadd.f32 %v2016, %v2082
    %v2115 = vadd.f32 %v2017, %v2083
    %v2116 = vadd.f32 %v2018, %v2084
    %v2117 = vadd.f32 %v2019, %v2085
    %v2118 = vadd.f32 %v2020, %v2086
    %v2119 = vadd.f32 %v2021, %v2087
    %v2120 = vadd.f32 %v2022, %v2088
    %v2121 = vadd.f32 %v2023, %v2089
    %v2122 = vadd.f32 %v2024, %v2090
    %v2123 = vadd.f32 %v2025, %v2091
    %v2124 = vadd.f32 %v2026, %v2092
    %v2125 = vadd.f32 %v2027, %v2093
    %2126 = vst [vmem:[#allocation10] sm:$0xff] %v2094
    %2127 = vst [vmem:[#allocation10 + $0x8] sm:$0xff] %v2095
    %2128 = vst [vmem:[#allocation10 + $0x10] sm:$0xff] %v2096
    %2129 = vst [vmem:[#allocation10 + $0x18] sm:$0xff] %v2097
    %2130 = vst [vmem:[#allocation10 + $0x20] sm:$0xff] %v2098
    %2131 = vst [vmem:[#allocation10 + $0x28] sm:$0xff] %v2099
    %2132 = vst [vmem:[#allocation10 + $0x30] sm:$0xff] %v2100
    %2133 = vst [vmem:[#allocation10 + $0x38] sm:$0xff] %v2101
    %2134 = vst [vmem:[#allocation10 + $0x40] sm:$0xff] %v2102
    %2135 = vst [vmem:[#allocation10 + $0x48] sm:$0xff] %v2103
    %2136 = vst [vmem:[#allocation10 + $0x50] sm:$0xff] %v2104
    %2137 = vst [vmem:[#allocation10 + $0x58] sm:$0xff] %v2105
    %2138 = vst [vmem:[#allocation10 + $0x60] sm:$0xff] %v2106
    %2139 = vst [vmem:[#allocation10 + $0x68] sm:$0xff] %v2107
    %2140 = vst [vmem:[#allocation10 + $0x70] sm:$0xff] %v2108
    %2141 = vst [vmem:[#allocation10 + $0x78] sm:$0xff] %v2109
    %2142 = vst [vmem:[#allocation10 + $0x80] sm:$0xff] %v2110
    %2143 = vst [vmem:[#allocation10 + $0x88] sm:$0xff] %v2111
    %2144 = vst [vmem:[#allocation10 + $0x90] sm:$0xff] %v2112
    %2145 = vst [vmem:[#allocation10 + $0x98] sm:$0xff] %v2113
    %2146 = vst [vmem:[#allocation10 + $0xa0] sm:$0xff] %v2114
    %2147 = vst [vmem:[#allocation10 + $0xa8] sm:$0xff] %v2115
    %2148 = vst [vmem:[#allocation10 + $0xb0] sm:$0xff] %v2116
    %2149 = vst [vmem:[#allocation10 + $0xb8] sm:$0xff] %v2117
    %2150 = vst [vmem:[#allocation10 + $0xc0] sm:$0xff] %v2118
    %2151 = vst [vmem:[#allocation10 + $0xc8] sm:$0xff] %v2119
    %2152 = vst [vmem:[#allocation10 + $0xd0] sm:$0xff] %v2120
    %2153 = vst [vmem:[#allocation10 + $0xd8] sm:$0xff] %v2121
    %2154 = vst [vmem:[#allocation10 + $0xe0] sm:$0xff] %v2122
    %2155 = vst [vmem:[#allocation10 + $0xe8] sm:$0xff] %v2123
    %2156 = vst [vmem:[#allocation10 + $0xf0] sm:$0xff] %v2124
    %2157 = vst [vmem:[#allocation10 + $0xf8] sm:$0xff] %v2125
    // Predicated region
    $region26: #{tpu_custom_call.1} parent=1 // pred_check
      _
    $region27: #{tpu_custom_call.1} parent=1 // pred_check_branch
      %2159 = sbr.rel (0) target = $region29
    $region28: #{tpu_custom_call.1} parent=1 // pred_region
      %s2161 = ssub.s32 4096, 4096
      %2162 = vsyncadd [#allocation5], %s2161
      %s2163 = sshll.u32 [#allocation10], 4
      %s2164 = int_to_ptr.vmem [resolvable:$true] %s2163
      %2169 = dma.vmem_to_hbm [thread:$0]  %s2164, 4096, %s3, [#allocation5], 128, 128, 8
    $region29: #{tpu_custom_call.1} parent=1 // pred_fallthru
      _
    // Predicated region
    $region30: #{tpu_custom_call.1} parent=1 // pred_check
      _
    $region31: #{tpu_custom_call.1} parent=1 // pred_check_branch
      %2171 = sbr.rel (0) target = $region33
    $region32: #{tpu_custom_call.1} parent=1 // pred_region
      %2172 = dma.done [#allocation5], 4096
    $region33: #{tpu_custom_call.1} parent=1 // pred_fallthru
      _
    %2173 = vsyncpa [#allocation4], 1
    %2174 = vsyncpa [#allocation5], 1
    %2175 = vsyncpa [#allocation6], 1
    %2176 = vsyncpa [#allocation7], 1

</llo_original>
